<compile_context>
chip_gen: v7x
topology: tpu7x:2x2x1
jax: 0.10.0
libtpu: 0.0.40
codegen_flags: <defaults>
</compile_context>

<pallas_src>
import functools

import jax
import jax.numpy as jnp
from jax.experimental import pallas as pl
from jax.experimental.pallas import tpu as pltpu


_COMPUTE_DTYPE = jnp.bfloat16        # MXU input dtype (use float8_e4m3fn on v7x)
_VMEM_FALLBACK = 64 * 1024 * 1024    # conservative fallback if TPU query fails
_VMEM_USABLE_FRACTION = 0.875        # leave headroom for compiler scratch
_MAX_BLOCK_B = 1024
_MAX_BLOCK_H = 2048


# --------------------------------------------------------------------------
# Kernels
# --------------------------------------------------------------------------
def _sae_kernel_resident(x_ref, wenc_ref, benc_ref, wdec_ref, bdec_ref,
                         recon_ref, feat_ref):
    # x_ref:    (TB, D)   batch tile
    # wenc_ref: (D, H)    encode.weight.T   (resident, compute dtype)
    # benc_ref: (1, H)    encode.bias       (f32)
    # wdec_ref: (H, D)    decode.weight.T   (resident, compute dtype)
    # bdec_ref: (1, D)    decode.bias       (f32)
    x = x_ref[...].astype(wenc_ref.dtype)
    enc = jnp.dot(x, wenc_ref[...], preferred_element_type=jnp.float32)
    feat = jnp.maximum(enc + benc_ref[...], 0.0)               # f32 bias + ReLU
    rec = jnp.dot(feat.astype(wdec_ref.dtype), wdec_ref[...],
                  preferred_element_type=jnp.float32) + bdec_ref[...]
    feat_ref[...] = feat.astype(feat_ref.dtype)
    recon_ref[...] = rec.astype(recon_ref.dtype)


def _sae_kernel_htiled_inplace(x_ref, wenc_ref, benc_ref, wdec_ref, bdec_ref,
                               recon_ref, feat_ref):
    # grid = (batch tiles, hidden tiles); axis 1 is the decode reduction.
    # recon_ref is f32 and its block index is CONSTANT over j while j is marked
    # "arbitrary", so the output block stays resident in VMEM across the whole
    # reduction and is used directly as the accumulator (no scratch needed).
    # NOTE: do not mark axis 1 "parallel" or reorder the grid without
    # reintroducing a scratch accumulator.
    j = pl.program_id(1)
    x = x_ref[...].astype(wenc_ref.dtype)
    enc = jnp.dot(x, wenc_ref[...], preferred_element_type=jnp.float32)
    feat = jnp.maximum(enc + benc_ref[...], 0.0)
    feat_ref[...] = feat.astype(feat_ref.dtype)
    partial = jnp.dot(feat.astype(wdec_ref.dtype), wdec_ref[...],
                      preferred_element_type=jnp.float32)

    @pl.when(j == 0)
    def _():
        recon_ref[...] = partial + bdec_ref[...]

    @pl.when(j != 0)
    def _():
        recon_ref[...] = recon_ref[...] + partial


def _sae_kernel_htiled_scratch(x_ref, wenc_ref, benc_ref, wdec_ref, bdec_ref,
                               recon_ref, feat_ref, acc_ref):
    # Same schedule as above, but for non-f32 reconstruction outputs: keep the
    # running sum in an f32 VMEM scratch and cast once at the last j step.
    j = pl.program_id(1)

    @pl.when(j == 0)
    def _():
        acc_ref[...] = jnp.zeros_like(acc_ref)

    x = x_ref[...].astype(wenc_ref.dtype)
    enc = jnp.dot(x, wenc_ref[...], preferred_element_type=jnp.float32)
    feat = jnp.maximum(enc + benc_ref[...], 0.0)
    feat_ref[...] = feat.astype(feat_ref.dtype)
    acc_ref[...] = acc_ref[...] + jnp.dot(
        feat.astype(wdec_ref.dtype), wdec_ref[...],
        preferred_element_type=jnp.float32)

    @pl.when(j == pl.num_programs(1) - 1)
    def _():
        recon_ref[...] = (acc_ref[...] + bdec_ref[...]).astype(recon_ref.dtype)


# --------------------------------------------------------------------------
# Hardware / layout helpers
# --------------------------------------------------------------------------
@functools.lru_cache(maxsize=1)
def _vmem_capacity_bytes():
    try:
        info = pltpu.get_tpu_info()
        cap = int(getattr(info, "vmem_capacity_bytes", 0) or 0)
        if cap > 0:
            return cap
    except Exception:
        pass
    return _VMEM_FALLBACK


@functools.lru_cache(maxsize=1)
def _single_buffer_supported():
    """Probe pl.Buffered(1) support once with a tiny known-good kernel.

    The probe kernel itself is trivially valid, so any failure here is
    attributable to pipeline_mode support (not swallowed real OOMs of the
    actual SAE kernels).
    """
    if not hasattr(pl, "Buffered"):
        return False

    def _probe(w_ref, x_ref, o_ref):
        o_ref[...] = x_ref[...] + w_ref[...]

    try:
        f = pl.pallas_call(
            _probe,
            out_shape=jax.ShapeDtypeStruct((16, 128), jnp.float32),
            grid_spec=pltpu.PrefetchScalarGridSpec(
                num_scalar_prefetch=0,
                grid=(2,),
                in_specs=[pl.BlockSpec((8, 128), lambda i: (0, 0),
                                       pipeline_mode=pl.Buffered(1)),
                          pl.BlockSpec((8, 128), lambda i: (i, 0))],
                out_specs=pl.BlockSpec((8, 128), lambda i: (i, 0))))
        jax.block_until_ready(f(jnp.zeros((8, 128), jnp.float32),
                                jnp.ones((16, 128), jnp.float32)))
        return True
    except Exception:
        return False


def _sublane_min(dtype):
    # minimum second-to-last tile dim by element width (f32:8, bf16:16, 8-bit:32)
    return {4: 8, 2: 16, 1: 32}.get(jnp.dtype(dtype).itemsize, 8)


def _block_candidates(total, multiple, cap):
    cands = {d for d in range(multiple, min(total, cap) + 1, multiple)
             if total % d == 0}
    if total <= cap:
        cands.add(total)                 # full extent is always layout-legal
    return sorted(cands, reverse=True)


def _resident_vmem_bytes(block_b, D, H, x_item, w_item, out_item, feat_item,
                         nbuf_w):
    weights = nbuf_w * (2 * D * H * w_item + 4 * (H + D))
    pipelined = 2 * block_b * (D * x_item + D * out_item + H * feat_item)
    temps = block_b * (4 * H + 4 * H + 4 * D)        # enc, feat, rec in f32
    return weights + pipelined + temps


def _htiled_vmem_bytes(block_b, block_h, D, x_item, w_item, out_item,
                       feat_item, scratch_acc):
    weights = 2 * (2 * D * block_h * w_item) + 2 * 4 * (block_h + D)
    pipelined = 2 * block_b * (D * x_item + D * out_item + block_h * feat_item)
    acc = block_b * D * 4 if scratch_acc else 0
    temps = block_b * (4 * block_h + 4 * block_h + 4 * D)
    return weights + pipelined + acc + temps


def _choose_resident_block_b(B, D, H, x_dtype, w_dtype, out_dtype, feat_dtype,
                             nbuf_w, budget):
    min_b = max(_sublane_min(d) for d in (x_dtype, out_dtype, feat_dtype))
    x_i, w_i, o_i, f_i = (jnp.dtype(d).itemsize
                          for d in (x_dtype, w_dtype, out_dtype, feat_dtype))
    prefer_two = B >= 2 * min_b
    for bb in _block_candidates(B, min_b, _MAX_BLOCK_B):
        if prefer_two and bb == B:
            continue                      # keep >= 2 batch tiles (megacore)
        if _resident_vmem_bytes(bb, D, H, x_i, w_i, o_i, f_i, nbuf_w) <= budget:
            return bb
    return None                           # resident schedule does not fit


def _choose_htiled_blocks(B, D, H, x_dtype, w_dtype, out_dtype, feat_dtype,
                          budget):
    min_b = max(_sublane_min(d) for d in (x_dtype, out_dtype, feat_dtype))
    x_i, w_i, o_i, f_i = (jnp.dtype(d).itemsize
                          for d in (x_dtype, w_dtype, out_dtype, feat_dtype))
    scratch_acc = jnp.dtype(out_dtype) != jnp.float32
    bb_cands = _block_candidates(B, min_b, _MAX_BLOCK_B)
    bh_cands = _block_candidates(H, 128, _MAX_BLOCK_H)
    prefer_two = B >= 2 * min_b
    # Prioritize the largest block_b (it sets the flops/byte of the
    # weight-streaming step), then the largest block_h that still fits.
    for bb in bb_cands:
        if prefer_two and bb == B:
            continue
        for bh in bh_cands:
            if _htiled_vmem_bytes(bb, bh, D, x_i, w_i, o_i, f_i,
                                  scratch_acc) <= budget:
                return bb, bh
    return (bb_cands[-1] if bb_cands else B,
            bh_cands[-1] if bh_cands else H)


# --------------------------------------------------------------------------
# pallas_call builders (cached so repeated forwards reuse the same callable)
# --------------------------------------------------------------------------
@functools.lru_cache(maxsize=None)
def _resident_call(B, D, H, block_b, x_dtype, w_dtype, out_dtype, feat_dtype,
                   single_buf, vmem_limit):
    w_kwargs = dict(pipeline_mode=pl.Buffered(1)) if single_buf else {}

    in_specs = [
        pl.BlockSpec((block_b, D), lambda i: (i, 0)),           # x tile
        pl.BlockSpec((D, H), lambda i: (0, 0), **w_kwargs),     # W_enc.T
        pl.BlockSpec((1, H), lambda i: (0, 0), **w_kwargs),     # b_enc
        pl.BlockSpec((H, D), lambda i: (0, 0), **w_kwargs),     # W_dec.T
        pl.BlockSpec((1, D), lambda i: (0, 0), **w_kwargs),     # b_dec
    ]
    out_specs = [
        pl.BlockSpec((block_b, D), lambda i: (i, 0)),           # reconstruction
        pl.BlockSpec((block_b, H), lambda i: (i, 0)),           # features
    ]

    return pl.pallas_call(
        _sae_kernel_resident,
        out_shape=(jax.ShapeDtypeStruct((B, D), out_dtype),
                   jax.ShapeDtypeStruct((B, H), feat_dtype)),
        grid_spec=pltpu.PrefetchScalarGridSpec(
            num_scalar_prefetch=0,
            grid=(B // block_b,),
            in_specs=in_specs,
            out_specs=out_specs,
        ),
        compiler_params=pltpu.CompilerParams(
            dimension_semantics=("parallel",),
            vmem_limit_bytes=vmem_limit),
    )


@functools.lru_cache(maxsize=None)
def _htiled_call(B, D, H, block_b, block_h, x_dtype, w_dtype, out_dtype,
                 feat_dtype, vmem_limit):
    acc_in_out = jnp.dtype(out_dtype) == jnp.float32

    in_specs = [
        pl.BlockSpec((block_b, D), lambda i, j: (i, 0)),        # x (const over j)
        pl.BlockSpec((D, block_h), lambda i, j: (0, j)),        # W_enc.T col tile
        pl.BlockSpec((1, block_h), lambda i, j: (0, j)),        # b_enc tile
        pl.BlockSpec((block_h, D), lambda i, j: (j, 0)),        # W_dec.T row tile
        pl.BlockSpec((1, D), lambda i, j: (0, 0)),              # b_dec
    ]
    out_specs = [
        pl.BlockSpec((block_b, D), lambda i, j: (i, 0)),        # recon (resident over j)
        pl.BlockSpec((block_b, block_h), lambda i, j: (i, j)),  # features per H-tile
    ]

    kernel = _sae_kernel_htiled_inplace if acc_in_out else _sae_kernel_htiled_scratch
    scratch = [] if acc_in_out else [pltpu.VMEM((block_b, D), jnp.float32)]

    return pl.pallas_call(
        kernel,
        out_shape=(jax.ShapeDtypeStruct((B, D), out_dtype),
                   jax.ShapeDtypeStruct((B, H), feat_dtype)),
        grid_spec=pltpu.PrefetchScalarGridSpec(
            num_scalar_prefetch=0,
            grid=(B // block_b, H // block_h),
            in_specs=in_specs,
            out_specs=out_specs,
            scratch_shapes=scratch,
        ),
        compiler_params=pltpu.CompilerParams(
            # Axis 1 is the decode reduction and MUST stay "arbitrary":
            # the recon output block is used as a resident accumulator.
            dimension_semantics=("parallel", "arbitrary"),
            vmem_limit_bytes=vmem_limit),
    )


# --------------------------------------------------------------------------
# Public API
# --------------------------------------------------------------------------
def init_sae_params(key, input_size, hidden_size, init_scale=0.1,
                    dtype=jnp.float32):
    """Mirror SAE.__init__ (row-normalized random decoder, tied init)."""
    dec_w = jax.random.normal(key, (hidden_size, input_size), dtype=dtype)
    norms = jnp.linalg.norm(dec_w, axis=1, keepdims=True)
    dec_w = init_scale * dec_w / norms
    w_enc = dec_w                            # encode.weight  [H, D]
    w_dec = dec_w.T                          # decode.weight  [D, H]
    b_enc = jnp.zeros((hidden_size,), dtype)
    b_dec = jnp.zeros((input_size,), dtype)
    return w_enc, b_enc, w_dec, b_dec


def prepare_sae_params(w_enc, b_enc, w_dec, b_dec,
                       compute_dtype=_COMPUTE_DTYPE):
    """One-time parameter prep: pre-transpose + cast for the MXU.

    compute_dtype=jnp.bfloat16 by default; on v7x jnp.float8_e4m3fn halves
    weight VMEM/HBM traffic (accuracy-dependent, accumulation stays f32).
    """
    w_enc_t = jnp.asarray(w_enc).T.astype(compute_dtype)        # [D, H]
    w_dec_t = jnp.asarray(w_dec).T.astype(compute_dtype)        # [H, D]
    b_enc2 = jnp.asarray(b_enc).reshape(1, -1).astype(jnp.float32)
    b_dec2 = jnp.asarray(b_dec).reshape(1, -1).astype(jnp.float32)
    return w_enc_t, b_enc2, w_dec_t, b_dec2


def sae_forward(x, w_enc_t, b_enc, w_dec_t, b_dec, *, feat_dtype=None,
                block_b=None, block_h=None, force_htiled=None):
    """SAE forward.

    x:       [B, D] input (cast to the weight dtype inside the kernel)
    w_enc_t: [D, H] encode.weight.T (pre-cast, e.g. bf16)
    b_enc:   [1, H] encode.bias (f32)
    w_dec_t: [H, D] decode.weight.T (pre-cast, e.g. bf16)
    b_dec:   [1, D] decode.bias (f32)
    feat_dtype: dtype for the features output (default x.dtype; bf16 halves
                the dominant (B, H) HBM store).

    Returns (reconstruction [B, D] in x.dtype, features [B, H] in feat_dtype).
    """
    B, D = x.shape
    Dw, H = w_enc_t.shape
    assert Dw == D and w_dec_t.shape == (H, D)
    assert b_enc.shape == (1, H) and b_dec.shape == (1, D)

    x_dtype = jnp.dtype(x.dtype)
    w_dtype = jnp.dtype(w_enc_t.dtype)
    out_dtype = x_dtype
    feat_dt = out_dtype if feat_dtype is None else jnp.dtype(feat_dtype)

    # Per-chip VMEM budget (128 MiB v5e/v6e, 64 MiB v7x) with headroom.
    budget = int(_vmem_capacity_bytes() * _VMEM_USABLE_FRACTION)

    single_buf = _single_buffer_supported()
    nbuf_w = 1 if single_buf else 2

    x_i, w_i, o_i, f_i = (d.itemsize for d in (x_dtype, w_dtype, out_dtype, feat_dt))
    min_b = max(_sublane_min(d) for d in (x_dtype, out_dtype, feat_dt))

    # ---- schedule decision: resident whenever the FULL working set fits ----
    resident_bb = block_b
    if resident_bb is None:
        resident_bb = _choose_resident_block_b(
            B, D, H, x_dtype, w_dtype, out_dtype, feat_dt, nbuf_w, budget)
    use_htiled = (resident_bb is None) if force_htiled is None else bool(force_htiled)

    if not use_htiled:
        bb = resident_bb
        if bb is None:                      # user forced resident; smallest tile
            cands = _block_candidates(B, min_b, _MAX_BLOCK_B)
            bb = cands[-1] if cands else B
        assert B % bb == 0
        assert bb == B or bb % min_b == 0
        est = _resident_vmem_bytes(bb, D, H, x_i, w_i, o_i, f_i, nbuf_w)
        vmem_limit = int(min(budget, max(16 << 20, int(1.2 * est) + (2 << 20))))
        call = _resident_call(B, D, H, bb, x_dtype, w_dtype, out_dtype,
                              feat_dt, single_buf, vmem_limit)
        return call(x, w_enc_t, b_enc, w_dec_t, b_dec)

    # ---- H-tiled (weight-streaming) schedule ----
    bb, bh = block_b, block_h
    if bb is None or bh is None:
        auto_bb, auto_bh = _choose_htiled_blocks(
            B, D, H, x_dtype, w_dtype, out_dtype, feat_dt, budget)
        bb = auto_bb if bb is None else bb
        bh = auto_bh if bh is None else bh
    assert B % bb == 0 and H % bh == 0
    assert bb == B or bb % min_b == 0
    assert bh == H or bh % 128 == 0
    scratch_acc = out_dtype != jnp.float32
    est = _htiled_vmem_bytes(bb, bh, D, x_i, w_i, o_i, f_i, scratch_acc)
    vmem_limit = int(min(budget, max(16 << 20, int(1.2 * est) + (2 << 20))))
    # TODO(synk): when B is tiny and bb cannot grow, pl.Buffered(3) on the
    # streamed weight tiles can hide exposed DMA latency (cheap under 128 MiB).
    call = _htiled_call(B, D, H, bb, bh, x_dtype, w_dtype, out_dtype,
                        feat_dt, vmem_limit)
    return call(x, w_enc_t, b_enc, w_dec_t, b_dec)


def sae_forward_ref(x, w_enc, b_enc, w_dec, b_dec,
                    compute_dtype=jnp.float32):
    """Pure-JAX reference; compute_dtype=bf16 emulates the kernel's MXU inputs."""
    f32 = jnp.float32
    xc = x.astype(compute_dtype).astype(f32)
    we = w_enc.astype(compute_dtype).astype(f32)
    wd = w_dec.astype(compute_dtype).astype(f32)
    enc = xc @ we.T + b_enc.astype(f32)
    feat = jnp.maximum(enc, 0.0)
    rec = feat.astype(compute_dtype).astype(f32) @ wd.T + b_dec.astype(f32)
    return rec, feat


if __name__ == "__main__":
    # Small but lane-aligned demo shapes: D, H multiples of 128, multiple
    # batch tiles so pipelining / megacore sharding are actually exercised.
    B, D, H = 256, 128, 512
    key = jax.random.PRNGKey(0)
    kx, kw = jax.random.split(key)

    x = jax.random.normal(kx, (B, D), dtype=jnp.float32)
    w_enc, b_enc, w_dec, b_dec = init_sae_params(kw, D, H, init_scale=0.1)
    params = prepare_sae_params(w_enc, b_enc, w_dec, b_dec)   # hoisted prep

    # 1) Auto schedule: weight-resident, auto block_b (>=2 tiles, batch-parallel).
    recon, feat = sae_forward(x, *params)
    jax.block_until_ready((recon, feat))

    # 2) Forced H-tiled schedule: decode reduction accumulates in-place in the
    #    resident f32 recon output block (no scratch accumulator).
    recon_h, feat_h = sae_forward(x, *params, block_b=128, block_h=256,
                                  force_htiled=True)
    jax.block_until_ready((recon_h, feat_h))

    # 3) bf16 feature writeback (halves the dominant (B, H) HBM store term).
    recon_b, feat_b = sae_forward(x, *params, feat_dtype=jnp.bfloat16)
    jax.block_until_ready((recon_b, feat_b))

    # References: bf16-rounded inputs (matches the kernels' MXU path) and the
    # exact f32 PyTorch semantics (looser tolerance due to bf16 weights).
    recon_bf, feat_bf = sae_forward_ref(x, w_enc, b_enc, w_dec, b_dec,
                                        compute_dtype=jnp.bfloat16)
    recon_f32, feat_f32 = sae_forward_ref(x, w_enc, b_enc, w_dec, b_dec,
                                          compute_dtype=jnp.float32)

    assert recon.shape == (B, D) and feat.shape == (B, H)
    for r, f in ((recon, feat), (recon_h, feat_h)):
        assert jnp.allclose(f, feat_bf, atol=5e-3, rtol=5e-3)
        assert jnp.allclose(r, recon_bf, atol=5e-3, rtol=5e-3)
        assert jnp.allclose(f, feat_f32, atol=5e-2, rtol=5e-2)
        assert jnp.allclose(r, recon_f32, atol=5e-2, rtol=5e-2)

    assert feat_b.dtype == jnp.bfloat16
    assert jnp.allclose(feat_b.astype(jnp.float32), feat_bf, atol=1e-2, rtol=2e-2)
    assert jnp.allclose(recon_b, recon_bf, atol=5e-3, rtol=5e-3)

    print("KERNEL_OK")
</pallas_src>

<mosaic_0001>
module attributes {stable_mosaic.version = 11 : i64} {
  func.func @_probe(%arg0: i32, %arg1: memref<8x128xf32, #tpu.memory_space<vmem>>, %arg2: memref<8x128xf32, #tpu.memory_space<vmem>>, %arg3: memref<8x128xf32, #tpu.memory_space<vmem>>) attributes {dimension_semantics = [#tpu.dimension_semantics<arbitrary>], iteration_bounds = array<i64: 2>, scalar_prefetch = 0 : i64, scratch_operands = 0 : i64, tpu.core_type = #tpu.core_type<tc>, window_params = [{pipeline_mode = #tpu.pipeline_mode<synchronous>, transform_indices = @transform_0, window_bounds = array<i64: 8, 128>}, {transform_indices = @transform_1, window_bounds = array<i64: 8, 128>}, {transform_indices = @transform_2, window_bounds = array<i64: 8, 128>}]} {
    %c0 = arith.constant 0 : index
    %c0_0 = arith.constant 0 : index
    %0 = vector.load %arg2[%c0, %c0_0] : memref<8x128xf32, #tpu.memory_space<vmem>>, vector<8x128xf32>
    %c0_1 = arith.constant 0 : index
    %c0_2 = arith.constant 0 : index
    %1 = vector.load %arg1[%c0_1, %c0_2] : memref<8x128xf32, #tpu.memory_space<vmem>>, vector<8x128xf32>
    %2 = arith.addf %0, %1 : vector<8x128xf32>
    %c0_3 = arith.constant 0 : index
    %c0_4 = arith.constant 0 : index
    %3 = vector.load %arg3[%c0_3, %c0_4] : memref<8x128xf32, #tpu.memory_space<vmem>>, vector<8x128xf32>
    tpu.vector_store %arg3[%c0_3, %c0_4], %2 {strides = array<i32>} : memref<8x128xf32, #tpu.memory_space<vmem>>, vector<8x128xf32>,
    return
  }
  func.func @transform_0(%arg0: i32) -> (i32, i32) {
    %c0_i32 = arith.constant 0 : i32
    %c0_i32_0 = arith.constant 0 : i32
    %c0_i32_1 = arith.constant 0 : i32
    return %c0_i32, %c0_i32_0 : i32, i32
  }
  func.func @transform_1(%arg0: i32) -> (i32, i32) {
    %c0_i32 = arith.constant 0 : i32
    %c0_i32_0 = arith.constant 0 : i32
    return %arg0, %c0_i32 : i32, i32
  }
  func.func @transform_2(%arg0: i32) -> (i32, i32) {
    %c0_i32 = arith.constant 0 : i32
    %c0_i32_0 = arith.constant 0 : i32
    return %arg0, %c0_i32 : i32, i32
  }
}

module attributes {stable_mosaic.version = 11 : i64} {
  func.func @_sae_kernel_resident(%arg0: i32, %arg1: memref<128x128xf32, #tpu.memory_space<vmem>>, %arg2: memref<128x512xbf16, #tpu.memory_space<vmem>>, %arg3: memref<1x512xf32, #tpu.memory_space<vmem>>, %arg4: memref<512x128xbf16, #tpu.memory_space<vmem>>, %arg5: memref<1x128xf32, #tpu.memory_space<vmem>>, %arg6: memref<128x128xf32, #tpu.memory_space<vmem>>, %arg7: memref<128x512xf32, #tpu.memory_space<vmem>>) attributes {dimension_semantics = [#tpu.dimension_semantics<parallel>], iteration_bounds = array<i64: 2>, scalar_prefetch = 0 : i64, scratch_operands = 0 : i64, tpu.core_type = #tpu.core_type<tc>, window_params = [{transform_indices = @transform_0, window_bounds = array<i64: 128, 128>}, {pipeline_mode = #tpu.pipeline_mode<synchronous>, transform_indices = @transform_1, window_bounds = array<i64: 128, 512>}, {pipeline_mode = #tpu.pipeline_mode<synchronous>, transform_indices = @transform_2, window_bounds = array<i64: 1, 512>}, {pipeline_mode = #tpu.pipeline_mode<synchronous>, transform_indices = @transform_3, window_bounds = array<i64: 512, 128>}, {pipeline_mode = #tpu.pipeline_mode<synchronous>, transform_indices = @transform_4, window_bounds = array<i64: 1, 128>}, {transform_indices = @transform_5, window_bounds = array<i64: 128, 128>}, {transform_indices = @transform_6, window_bounds = array<i64: 128, 512>}]} {
    %c0 = arith.constant 0 : index
    %c0_0 = arith.constant 0 : index
    %0 = vector.load %arg1[%c0, %c0_0] : memref<128x128xf32, #tpu.memory_space<vmem>>, vector<128x128xf32>
    %1 = arith.truncf %0 : vector<128x128xf32> to vector<128x128xbf16>
    %c0_1 = arith.constant 0 : index
    %c0_2 = arith.constant 0 : index
    %2 = vector.load %arg2[%c0_1, %c0_2] : memref<128x512xbf16, #tpu.memory_space<vmem>>, vector<128x512xbf16>
    %cst = arith.constant dense<0.000000e+00> : vector<128x512xf32>
    %3 = tpu.matmul %1, %2, %cst {dimension_numbers = #tpu.dot_dimension_numbers<[1], [0], [0], [1], [0, 0, 1, 1], [], []>} : vector<128x128xbf16>, vector<128x512xbf16>, vector<128x512xf32> -> vector<128x512xf32>
    %c0_3 = arith.constant 0 : index
    %c0_4 = arith.constant 0 : index
    %4 = vector.load %arg3[%c0_3, %c0_4] : memref<1x512xf32, #tpu.memory_space<vmem>>, vector<1x512xf32>
    %5 = vector.broadcast %4 : vector<1x512xf32> to vector<128x512xf32>
    %6 = arith.addf %3, %5 : vector<128x512xf32>
    %cst_5 = arith.constant 0.000000e+00 : f32
    %7 = vector.broadcast %cst_5 : f32 to vector<128x512xf32>
    %8 = arith.maximumf %6, %7 : vector<128x512xf32>
    %9 = arith.truncf %8 : vector<128x512xf32> to vector<128x512xbf16>
    %c0_6 = arith.constant 0 : index
    %c0_7 = arith.constant 0 : index
    %10 = vector.load %arg4[%c0_6, %c0_7] : memref<512x128xbf16, #tpu.memory_space<vmem>>, vector<512x128xbf16>
    %cst_8 = arith.constant dense<0.000000e+00> : vector<128x128xf32>
    %11 = tpu.matmul %9, %10, %cst_8 {dimension_numbers = #tpu.dot_dimension_numbers<[1], [0], [0], [1], [0, 0, 1, 1], [], []>} : vector<128x512xbf16>, vector<512x128xbf16>, vector<128x128xf32> -> vector<128x128xf32>
    %c0_9 = arith.constant 0 : index
    %c0_10 = arith.constant 0 : index
    %12 = vector.load %arg5[%c0_9, %c0_10] : memref<1x128xf32, #tpu.memory_space<vmem>>, vector<1x128xf32>
    %13 = vector.broadcast %12 : vector<1x128xf32> to vector<128x128xf32>
    %14 = arith.addf %11, %13 : vector<128x128xf32>
    %c0_11 = arith.constant 0 : index
    %c0_12 = arith.constant 0 : index
    %15 = vector.load %arg7[%c0_11, %c0_12] : memref<128x512xf32, #tpu.memory_space<vmem>>, vector<128x512xf32>
    tpu.vector_store %arg7[%c0_11, %c0_12], %8 {strides = array<i32>} : memref<128x512xf32, #tpu.memory_space<vmem>>, vector<128x512xf32>,
    %c0_13 = arith.constant 0 : index
    %c0_14 = arith.constant 0 : index
    %16 = vector.load %arg6[%c0_13, %c0_14] : memref<128x128xf32, #tpu.memory_space<vmem>>, vector<128x128xf32>
    tpu.vector_store %arg6[%c0_13, %c0_14], %14 {strides = array<i32>} : memref<128x128xf32, #tpu.memory_space<vmem>>, vector<128x128xf32>,
    return
  }
  func.func @transform_0(%arg0: i32) -> (i32, i32) {
    %c0_i32 = arith.constant 0 : i32
    %c0_i32_0 = arith.constant 0 : i32
    return %arg0, %c0_i32 : i32, i32
  }
  func.func @transform_1(%arg0: i32) -> (i32, i32) {
    %c0_i32 = arith.constant 0 : i32
    %c0_i32_0 = arith.constant 0 : i32
    %c0_i32_1 = arith.constant 0 : i32
    return %c0_i32, %c0_i32_0 : i32, i32
  }
  func.func @transform_2(%arg0: i32) -> (i32, i32) {
    %c0_i32 = arith.constant 0 : i32
    %c0_i32_0 = arith.constant 0 : i32
    %c0_i32_1 = arith.constant 0 : i32
    return %c0_i32, %c0_i32_0 : i32, i32
  }
  func.func @transform_3(%arg0: i32) -> (i32, i32) {
    %c0_i32 = arith.constant 0 : i32
    %c0_i32_0 = arith.constant 0 : i32
    %c0_i32_1 = arith.constant 0 : i32
    return %c0_i32, %c0_i32_0 : i32, i32
  }
  func.func @transform_4(%arg0: i32) -> (i32, i32) {
    %c0_i32 = arith.constant 0 : i32
    %c0_i32_0 = arith.constant 0 : i32
    %c0_i32_1 = arith.constant 0 : i32
    return %c0_i32, %c0_i32_0 : i32, i32
  }
  func.func @transform_5(%arg0: i32) -> (i32, i32) {
    %c0_i32 = arith.constant 0 : i32
    %c0_i32_0 = arith.constant 0 : i32
    return %arg0, %c0_i32 : i32, i32
  }
  func.func @transform_6(%arg0: i32) -> (i32, i32) {
    %c0_i32 = arith.constant 0 : i32
    %c0_i32_0 = arith.constant 0 : i32
    return %arg0, %c0_i32 : i32, i32
  }
}

</mosaic_0001>

<llo_original>
// kernel: tpu_custom_call.1
$region0: #{tpu_custom_call.1}
  #allocation0 [shape = 'u32[]', space=smem, size = 0x4, offset = 0x4, fixed_abs, tag = 'smem constant byte address 0x4 - core index']
  #allocation1 [shape = 'u32[144,128]{1,0:T(1,128)}', space=vmem, size = 0x12000, scoped, tag = 'internal scratch']
  %s0 = inlined_call_operand.hbm [shape: f32[8,128], index: 0, kind: input, shape index: {}]
  %s1 = inlined_call_operand.hbm [shape: f32[16,128], index: 1, kind: input, shape index: {}]
  %s2 = inlined_call_operand.hbm [shape: f32[16,128], index: 2, kind: output, shape index: {}]
  %s3 = sld [smem:[#allocation0]]
  $region49: #{tpu_custom_call.1} parent=0
    _
  %s5 = ssub.s32 1, %s3
  %s6 = scalar_select 0, %s5, %s3
  $region1: #{tpu_custom_call.1} parent=0
    #allocation2 [shape = 'u8[4096]{0}', space=vmem, size = 0x1000, scoped, tag = 'input window, operand 0, single buffered']
    #allocation3 [shape = 's32[2]{0}', space=sflag, size = 0x8, scoped, tag = 'scoped memory for tpu_custom_call.1']
    #allocation4 [shape = 's32[2]{0}', space=sflag, size = 0x8, scoped, tag = 'scoped memory for tpu_custom_call.1']
    #allocation5 [shape = 'u8[8192]{0}', space=vmem, size = 0x2000, scoped, tag = 'input window, operand 1']
    #allocation6 [shape = 's32[2]{0}', space=sflag, size = 0x8, scoped, tag = 'scoped memory for tpu_custom_call.1']
    #allocation7 [shape = 'u8[8192]{0}', space=vmem, size = 0x2000, scoped, tag = 'output window, operand 0']
    %7 = vsyncpa [#allocation3], 0
    %8 = vsyncpa [#allocation6], 0
    %s9 = scalar_lea.sflag [#allocation6], 1
    %10 = vsyncpa %s9, 0
    %11 = vsyncpa [#allocation4], 0
    %s12 = scalar_lea.sflag [#allocation4], 1
    %13 = vsyncpa %s12, 0
    loop: start=0, step=1, limit=4
    $region2: #{tpu_custom_call.1} parent=1 // loop_pre_header
      _
    $region3: #{tpu_custom_call.1} parent=1 // loop_header
      %s15 = sphi 0, %s19
      %p16 = scmp.ge.s32.totalorder %s15, 4
      %s23 = sphi 0, %s23
      %s25 = sphi 0, %s23
      %s26 = sphi 0, %s25
      %s40 = sphi 0, %s26
      %s46 = sphi 0, %s48
      %s49 = sphi 0, %s46
      %s50 = sphi 0, %s49
      %s66 = sphi 0, %s50
      %s72 = sphi 0, %s74
      %s75 = sphi 0, %s72
      %s76 = sphi 0, %s75
      %s92 = sphi 0, %s76
    $region4: #{tpu_custom_call.1} parent=1 // loop_header_branch
      %18 = sbr.rel (%p16) target = $region8
    $region5: #{tpu_custom_call.1} parent=1 // loop_body
      %s20 = ssub.s32 %s15, 1
      %s21 = ssub.s32 %s15, 2
      %s22 = sadd.s32 %s15, 1
      %s24 = sadd.s32 %s23, 1
      %p27 = scmp.eq.s32.totalorder %s15, 1
      %p28 = scmp.ne.s32.totalorder %s23, %s25
      %p29 = scmp.eq.s32.totalorder %s15, 0
      %p30 = por %p28, %p29
      %p31 = scmp.ne.s32.totalorder %s23, %s25
      %p32 = scmp.eq.s32.totalorder %s20, 1
      %p33 = por %p31, %p32
      %p34 = scmp.ne.s32.totalorder %s25, %s26
      %p35 = scmp.eq.s32.totalorder %s20, 0
      %p36 = por %p34, %p35
      %p37 = scmp.ne.s32.totalorder %s25, %s26
      %p38 = scmp.eq.s32.totalorder %s21, 1
      %p39 = por %p37, %p38
      %p41 = scmp.ne.s32.totalorder %s26, %s40
      %p42 = scmp.eq.s32.totalorder %s21, 0
      %p43 = por %p41, %p42
      %s44 = ssub.s32 %s15, %s22
      %p45 = scmp.eq.s32.totalorder %s44, 0
      %s47 = sadd.s32 %s46, 1
      %s48 = scalar_select %p45, %s46, %s47
      %p51 = pneg %p45
      %p52 = scmp.eq.s32.totalorder %s15, 1
      %p53 = por %p51, %p52
      %p54 = scmp.ne.s32.totalorder %s46, %s49
      %p55 = scmp.eq.s32.totalorder %s15, 0
      %p56 = por %p54, %p55
      %p57 = scmp.ne.s32.totalorder %s46, %s49
      %p58 = scmp.eq.s32.totalorder %s20, 1
      %p59 = por %p57, %p58
      %p60 = scmp.ne.s32.totalorder %s49, %s50
      %p61 = scmp.eq.s32.totalorder %s20, 0
      %p62 = por %p60, %p61
      %p63 = scmp.ne.s32.totalorder %s49, %s50
      %p64 = scmp.eq.s32.totalorder %s21, 1
      %p65 = por %p63, %p64
      %p67 = scmp.ne.s32.totalorder %s50, %s66
      %p68 = scmp.eq.s32.totalorder %s21, 0
      %p69 = por %p67, %p68
      %s70 = ssub.s32 %s15, %s22
      %p71 = scmp.eq.s32.totalorder %s70, 0
      %s73 = sadd.s32 %s72, 1
      %s74 = scalar_select %p71, %s72, %s73
      %p77 = pneg %p71
      %p78 = scmp.eq.s32.totalorder %s15, 1
      %p79 = por %p77, %p78
      %p80 = scmp.ne.s32.totalorder %s72, %s75
      %p81 = scmp.eq.s32.totalorder %s15, 0
      %p82 = por %p80, %p81
      %p83 = scmp.ne.s32.totalorder %s72, %s75
      %p84 = scmp.eq.s32.totalorder %s20, 1
      %p85 = por %p83, %p84
      %p86 = scmp.ne.s32.totalorder %s75, %s76
      %p87 = scmp.eq.s32.totalorder %s20, 0
      %p88 = por %p86, %p87
      %p89 = scmp.ne.s32.totalorder %s75, %s76
      %p90 = scmp.eq.s32.totalorder %s21, 1
      %p91 = por %p89, %p90
      %p93 = scmp.ne.s32.totalorder %s76, %s92
      %p94 = scmp.eq.s32.totalorder %s21, 0
      %p95 = por %p93, %p94
      %p96 = scmp.le.s32.totalorder 1, %s15
      %p97 = scmp.lt.s32.totalorder %s15, 3
      %p98 = pnand %p96, %p97
      %p99 = pneg %p98
      // Predicated region
      $region9: #{tpu_custom_call.1} parent=5 // pred_check
        _
      $region10: #{tpu_custom_call.1} parent=5 // pred_check_branch
        %101 = sbr.rel (%p98) target = $region12
      $region11: #{tpu_custom_call.1} parent=5 // pred_region
        %s102 = ssub.s32 %s15, 1
        // Predicated region
        $region13: #{tpu_custom_call.1} parent=11 // pred_check
          %p103 = pneg %p36
        $region14: #{tpu_custom_call.1} parent=11 // pred_check_branch
          %105 = sbr.rel (%p103) target = $region16
        $region15: #{tpu_custom_call.1} parent=11 // pred_region
          %s107 = ssub.s32 128, 128
          %108 = vsyncadd [#allocation3], %s107
          %s110 = sshll.u32 [#allocation2], 4
          %s111 = int_to_ptr.vmem [resolvable:$true] %s110
          %113 = dma.hbm_to_vmem [thread:$0]  %s0, 128, %s111, [#allocation3]
        $region16: #{tpu_custom_call.1} parent=11 // pred_fallthru
          _
      $region12: #{tpu_custom_call.1} parent=5 // pred_fallthru
        _
      %p114 = scmp.lt.s32.totalorder %s15, 2
      // Predicated region
      $region17: #{tpu_custom_call.1} parent=5 // pred_check
        %p115 = pneg %p114
      $region18: #{tpu_custom_call.1} parent=5 // pred_check_branch
        %117 = sbr.rel (%p115) target = $region20
      $region19: #{tpu_custom_call.1} parent=5 // pred_region
        // Predicated region
        $region21: #{tpu_custom_call.1} parent=19 // pred_check
          %p118 = pneg %p56
        $region22: #{tpu_custom_call.1} parent=19 // pred_check_branch
          %120 = sbr.rel (%p118) target = $region24
        $region23: #{tpu_custom_call.1} parent=19 // pred_region
          %s121 = sand.u32 %s46, 1
          %s122 = scalar_lea.sflag [#allocation6], %s121
          %s123 = sand.u32 %s46, 1
          %s124 = smul.addr %s123, 8
          %s125 = scalar_lea.vmem [#allocation5], %s124
          %s127 = ssub.s32 128, 128
          %128 = vsyncadd %s122, %s127
          %s129 = smul.addr %s15, 128
          %s130 = scalar_lea.hbm %s1, %s129
          %s132 = sshll.u32 %s125, 4
          %s133 = int_to_ptr.vmem [resolvable:$true] %s132
          %135 = dma.hbm_to_vmem [thread:$0]  %s130, 128, %s133, %s122
        $region24: #{tpu_custom_call.1} parent=19 // pred_fallthru
          _
      $region20: #{tpu_custom_call.1} parent=5 // pred_fallthru
        _
      %p136 = scmp.le.s32.totalorder 1, %s15
      %p137 = scmp.lt.s32.totalorder %s15, 3
      %p138 = pnand %p136, %p137
      %p139 = pneg %p138
      // Predicated region
      $region25: #{tpu_custom_call.1} parent=5 // pred_check
        _
      $region26: #{tpu_custom_call.1} parent=5 // pred_check_branch
        %141 = sbr.rel (%p138) target = $region28
      $region27: #{tpu_custom_call.1} parent=5 // pred_region
        %s142 = ssub.s32 %s15, 1
        // Predicated region
        $region29: #{tpu_custom_call.1} parent=27 // pred_check
          %p143 = pneg %p36
        $region30: #{tpu_custom_call.1} parent=27 // pred_check_branch
          %145 = sbr.rel (%p143) target = $region32
        $region31: #{tpu_custom_call.1} parent=27 // pred_region
          %146 = dma.done [#allocation3], 128
        $region32: #{tpu_custom_call.1} parent=27 // pred_fallthru
          _
        %s147 = sand.u32 %s49, 1
        %s148 = scalar_lea.sflag [#allocation6], %s147
        %s149 = sand.u32 %s49, 1
        %s150 = smul.addr %s149, 8
        %s151 = scalar_lea.vmem [#allocation5], %s150
        // Predicated region
        $region33: #{tpu_custom_call.1} parent=27 // pred_check
          %p152 = pneg %p62
        $region34: #{tpu_custom_call.1} parent=27 // pred_check_branch
          %154 = sbr.rel (%p152) target = $region36
        $region35: #{tpu_custom_call.1} parent=27 // pred_region
          %155 = dma.done %s148, 128
        $region36: #{tpu_custom_call.1} parent=27 // pred_fallthru
          _
        %p156 = pneg %p36
        %p157 = pneg %p33
        %s158 = sand.u32 %s49, 1
        %s159 = scalar_lea.sflag [#allocation6], %s158
        %s160 = sand.u32 %s49, 1
        %s161 = smul.addr %s160, 8
        %s162 = scalar_lea.vmem [#allocation5], %s161
        %p163 = pneg %p62
        %p164 = pneg %p59
        %p165 = pneg %p88
        %p166 = pneg %p85
        %s167 = sand.u32 %s75, 1
        %s168 = scalar_lea.sflag [#allocation4], %s167
        %s169 = sand.u32 %s75, 1
        %s170 = smul.addr %s169, 8
        %s171 = scalar_lea.vmem [#allocation7], %s170
        %v172 = vld [vmem:[%s151] sm:$0xff]
        %v173 = vld [vmem:[#allocation2] sm:$0xff]
        %v174 = vadd.f32 %v172, %v173
        %175 = vst [vmem:[%s171] sm:$0xff] %v174
        %s176 = sand.u32 %s75, 1
        %s177 = scalar_lea.sflag [#allocation4], %s176
        %s178 = sand.u32 %s75, 1
        %s179 = smul.addr %s178, 8
        %s180 = scalar_lea.vmem [#allocation7], %s179
        // Predicated region
        $region37: #{tpu_custom_call.1} parent=27 // pred_check
          %p181 = pneg %p85
        $region38: #{tpu_custom_call.1} parent=27 // pred_check_branch
          %183 = sbr.rel (%p181) target = $region40
        $region39: #{tpu_custom_call.1} parent=27 // pred_region
          %s185 = ssub.s32 128, 128
          %186 = vsyncadd %s177, %s185
          %s187 = smul.addr %s20, 128
          %s188 = scalar_lea.hbm %s2, %s187
          %s190 = sshll.u32 %s180, 4
          %s191 = int_to_ptr.vmem [resolvable:$true] %s190
          %193 = dma.vmem_to_hbm [thread:$0]  %s191, 128, %s188, %s177
        $region40: #{tpu_custom_call.1} parent=27 // pred_fallthru
          _
      $region28: #{tpu_custom_call.1} parent=5 // pred_fallthru
        _
      %p194 = scmp.le.s32.totalorder 2, %s15
      // Predicated region
      $region41: #{tpu_custom_call.1} parent=5 // pred_check
        %p195 = pneg %p194
      $region42: #{tpu_custom_call.1} parent=5 // pred_check_branch
        %197 = sbr.rel (%p195) target = $region44
      $region43: #{tpu_custom_call.1} parent=5 // pred_region
        %s198 = ssub.s32 %s15, 2
        // Predicated region
        $region45: #{tpu_custom_call.1} parent=43 // pred_check
          %p199 = pneg %p91
        $region46: #{tpu_custom_call.1} parent=43 // pred_check_branch
          %201 = sbr.rel (%p199) target = $region48
        $region47: #{tpu_custom_call.1} parent=43 // pred_region
          %s202 = sand.u32 %s76, 1
          %s203 = scalar_lea.sflag [#allocation4], %s202
          %s204 = sand.u32 %s76, 1
          %s205 = smul.addr %s204, 8
          %s206 = scalar_lea.vmem [#allocation7], %s205
          %207 = dma.done %s203, 128
        $region48: #{tpu_custom_call.1} parent=43 // pred_fallthru
          _
      $region44: #{tpu_custom_call.1} parent=5 // pred_fallthru
        _
    $region6: #{tpu_custom_call.1} parent=1 // loop_footer
      %s19 = sadd.s32 1, %s15
    $region7: #{tpu_custom_call.1} parent=1 // loop_footer_branch
      %14 = sbr.rel target = $region3
    $region8: #{tpu_custom_call.1} parent=1 // loop_exit
      _
    %208 = vsyncpa [#allocation3], 1
    %s209 = scalar_lea.sflag [#allocation3], 1
    %210 = vsyncpa %s209, 1
    %211 = vsyncpa [#allocation6], 1
    %s212 = scalar_lea.sflag [#allocation6], 1
    %213 = vsyncpa %s212, 1
    %214 = vsyncpa [#allocation4], 1
    %s215 = scalar_lea.sflag [#allocation4], 1
    %216 = vsyncpa %s215, 1

// kernel: tpu_custom_call.1
$region0: #{tpu_custom_call.1}
  #allocation0 [shape = 'u32[]', space=smem, size = 0x4, offset = 0x4, fixed_abs, tag = 'smem constant byte address 0x4 - core index']
  #allocation1 [shape = 'u32[144,128]{1,0:T(1,128)}', space=vmem, size = 0x12000, scoped, tag = 'internal scratch']
  %s0 = inlined_call_operand.hbm [shape: f32[256,128], index: 0, kind: input, shape index: {}]
  %s1 = inlined_call_operand.hbm [shape: bf16[128,512], index: 1, kind: input, shape index: {}]
  %s2 = inlined_call_operand.vmem [shape: f32[1,512], index: 2, kind: input, shape index: {}]
  %s3 = inlined_call_operand.hbm [shape: bf16[512,128], index: 3, kind: input, shape index: {}]
  %s4 = inlined_call_operand.vmem [shape: f32[1,128], index: 4, kind: input, shape index: {}]
  %s5 = inlined_call_operand.hbm [shape: f32[256,128], index: 5, kind: output, shape index: {0}]
  %s6 = inlined_call_operand.hbm [shape: f32[256,512], index: 6, kind: output, shape index: {1}]
  %7 = xla_tuple %s5, %s6
  %s8 = sld [smem:[#allocation0]]
  $region73: #{tpu_custom_call.1} parent=0
    _
  %s10 = ssub.s32 1, %s8
  %s11 = scalar_select 0, %s10, %s8
  $region1: #{tpu_custom_call.1} parent=0
    #allocation2 [shape = 'u8[131072]{0}', space=vmem, size = 0x20000, scoped, tag = 'input window, operand 0']
    #allocation3 [shape = 's32[2]{0}', space=sflag, size = 0x8, scoped, tag = 'scoped memory for tpu_custom_call.1']
    #allocation4 [shape = 's32[2]{0}', space=sflag, size = 0x8, scoped, tag = 'scoped memory for tpu_custom_call.1']
    #allocation5 [shape = 'u8[131072]{0}', space=vmem, size = 0x20000, scoped, tag = 'input window, operand 1, single buffered']
    #allocation6 [shape = 's32[1]{0}', space=sflag, size = 0x4, scoped, tag = 'scoped memory for tpu_custom_call.1']
    #allocation7 [shape = 'u8[131072]{0}', space=vmem, size = 0x20000, scoped, tag = 'input window, operand 3, single buffered']
    #allocation8 [shape = 'u8[131072]{0}', space=vmem, size = 0x20000, scoped, tag = 'output window, operand 0']
    #allocation9 [shape = 'u8[524288]{0}', space=vmem, size = 0x80000, scoped, tag = 'output window, operand 1']
    #allocation10 [shape = 's32[2]{0}', space=sflag, size = 0x8, scoped, tag = 'scoped memory for tpu_custom_call.1']
    %12 = vsyncpa [#allocation3], 0
    %s13 = scalar_lea.sflag [#allocation3], 1
    %14 = vsyncpa %s13, 0
    %15 = vsyncpa [#allocation6], 0
    %16 = vsyncpa [#allocation4], 0
    %s17 = scalar_lea.sflag [#allocation4], 1
    %18 = vsyncpa %s17, 0
    %19 = vsyncpa [#allocation10], 0
    %s20 = scalar_lea.sflag [#allocation10], 1
    %21 = vsyncpa %s20, 0
    loop: start=0, step=1, limit=4
    $region2: #{tpu_custom_call.1} parent=1 // loop_pre_header
      _
    $region3: #{tpu_custom_call.1} parent=1 // loop_header
      %s23 = sphi 0, %s27
      %p24 = scmp.ge.s32.totalorder %s23, 4
      %s33 = sphi 0, %s35
      %s36 = sphi 0, %s33
      %s37 = sphi 0, %s36
      %s53 = sphi 0, %s37
      %s57 = sphi 0, %s57
      %s59 = sphi 0, %s57
      %s60 = sphi 0, %s59
      %s74 = sphi 0, %s60
      %s78 = sphi 0, %s78
      %s80 = sphi 0, %s78
      %s81 = sphi 0, %s80
      %s95 = sphi 0, %s81
      %s99 = sphi 0, %s99
      %s101 = sphi 0, %s99
      %s102 = sphi 0, %s101
      %s116 = sphi 0, %s102
      %s120 = sphi 0, %s120
      %s122 = sphi 0, %s120
      %s123 = sphi 0, %s122
      %s137 = sphi 0, %s123
      %s143 = sphi 0, %s145
      %s146 = sphi 0, %s143
      %s147 = sphi 0, %s146
      %s163 = sphi 0, %s147
      %s169 = sphi 0, %s171
      %s172 = sphi 0, %s169
      %s173 = sphi 0, %s172
      %s189 = sphi 0, %s173
    $region4: #{tpu_custom_call.1} parent=1 // loop_header_branch
      %26 = sbr.rel (%p24) target = $region8
    $region5: #{tpu_custom_call.1} parent=1 // loop_body
      %s28 = ssub.s32 %s23, 1
      %s29 = ssub.s32 %s23, 2
      %s30 = sadd.s32 %s23, 1
      %s31 = ssub.s32 %s23, %s30
      %p32 = scmp.eq.s32.totalorder %s31, 0
      %s34 = sadd.s32 %s33, 1
      %s35 = scalar_select %p32, %s33, %s34
      %p38 = pneg %p32
      %p39 = scmp.eq.s32.totalorder %s23, 1
      %p40 = por %p38, %p39
      %p41 = scmp.ne.s32.totalorder %s33, %s36
      %p42 = scmp.eq.s32.totalorder %s23, 0
      %p43 = por %p41, %p42
      %p44 = scmp.ne.s32.totalorder %s33, %s36
      %p45 = scmp.eq.s32.totalorder %s28, 1
      %p46 = por %p44, %p45
      %p47 = scmp.ne.s32.totalorder %s36, %s37
      %p48 = scmp.eq.s32.totalorder %s28, 0
      %p49 = por %p47, %p48
      %p50 = scmp.ne.s32.totalorder %s36, %s37
      %p51 = scmp.eq.s32.totalorder %s29, 1
      %p52 = por %p50, %p51
      %p54 = scmp.ne.s32.totalorder %s37, %s53
      %p55 = scmp.eq.s32.totalorder %s29, 0
      %p56 = por %p54, %p55
      %s58 = sadd.s32 %s57, 1
      %p61 = scmp.eq.s32.totalorder %s23, 1
      %p62 = scmp.ne.s32.totalorder %s57, %s59
      %p63 = scmp.eq.s32.totalorder %s23, 0
      %p64 = por %p62, %p63
      %p65 = scmp.ne.s32.totalorder %s57, %s59
      %p66 = scmp.eq.s32.totalorder %s28, 1
      %p67 = por %p65, %p66
      %p68 = scmp.ne.s32.totalorder %s59, %s60
      %p69 = scmp.eq.s32.totalorder %s28, 0
      %p70 = por %p68, %p69
      %p71 = scmp.ne.s32.totalorder %s59, %s60
      %p72 = scmp.eq.s32.totalorder %s29, 1
      %p73 = por %p71, %p72
      %p75 = scmp.ne.s32.totalorder %s60, %s74
      %p76 = scmp.eq.s32.totalorder %s29, 0
      %p77 = por %p75, %p76
      %s79 = sadd.s32 %s78, 1
      %p82 = scmp.eq.s32.totalorder %s23, 1
      %p83 = scmp.ne.s32.totalorder %s78, %s80
      %p84 = scmp.eq.s32.totalorder %s23, 0
      %p85 = por %p83, %p84
      %p86 = scmp.ne.s32.totalorder %s78, %s80
      %p87 = scmp.eq.s32.totalorder %s28, 1
      %p88 = por %p86, %p87
      %p89 = scmp.ne.s32.totalorder %s80, %s81
      %p90 = scmp.eq.s32.totalorder %s28, 0
      %p91 = por %p89, %p90
      %p92 = scmp.ne.s32.totalorder %s80, %s81
      %p93 = scmp.eq.s32.totalorder %s29, 1
      %p94 = por %p92, %p93
      %p96 = scmp.ne.s32.totalorder %s81, %s95
      %p97 = scmp.eq.s32.totalorder %s29, 0
      %p98 = por %p96, %p97
      %s100 = sadd.s32 %s99, 1
      %p103 = scmp.eq.s32.totalorder %s23, 1
      %p104 = scmp.ne.s32.totalorder %s99, %s101
      %p105 = scmp.eq.s32.totalorder %s23, 0
      %p106 = por %p104, %p105
      %p107 = scmp.ne.s32.totalorder %s99, %s101
      %p108 = scmp.eq.s32.totalorder %s28, 1
      %p109 = por %p107, %p108
      %p110 = scmp.ne.s32.totalorder %s101, %s102
      %p111 = scmp.eq.s32.totalorder %s28, 0
      %p112 = por %p110, %p111
      %p113 = scmp.ne.s32.totalorder %s101, %s102
      %p114 = scmp.eq.s32.totalorder %s29, 1
      %p115 = por %p113, %p114
      %p117 = scmp.ne.s32.totalorder %s102, %s116
      %p118 = scmp.eq.s32.totalorder %s29, 0
      %p119 = por %p117, %p118
      %s121 = sadd.s32 %s120, 1
      %p124 = scmp.eq.s32.totalorder %s23, 1
      %p125 = scmp.ne.s32.totalorder %s120, %s122
      %p126 = scmp.eq.s32.totalorder %s23, 0
      %p127 = por %p125, %p126
      %p128 = scmp.ne.s32.totalorder %s120, %s122
      %p129 = scmp.eq.s32.totalorder %s28, 1
      %p130 = por %p128, %p129
      %p131 = scmp.ne.s32.totalorder %s122, %s123
      %p132 = scmp.eq.s32.totalorder %s28, 0
      %p133 = por %p131, %p132
      %p134 = scmp.ne.s32.totalorder %s122, %s123
      %p135 = scmp.eq.s32.totalorder %s29, 1
      %p136 = por %p134, %p135
      %p138 = scmp.ne.s32.totalorder %s123, %s137
      %p139 = scmp.eq.s32.totalorder %s29, 0
      %p140 = por %p138, %p139
      %s141 = ssub.s32 %s23, %s30
      %p142 = scmp.eq.s32.totalorder %s141, 0
      %s144 = sadd.s32 %s143, 1
      %s145 = scalar_select %p142, %s143, %s144
      %p148 = pneg %p142
      %p149 = scmp.eq.s32.totalorder %s23, 1
      %p150 = por %p148, %p149
      %p151 = scmp.ne.s32.totalorder %s143, %s146
      %p152 = scmp.eq.s32.totalorder %s23, 0
      %p153 = por %p151, %p152
      %p154 = scmp.ne.s32.totalorder %s143, %s146
      %p155 = scmp.eq.s32.totalorder %s28, 1
      %p156 = por %p154, %p155
      %p157 = scmp.ne.s32.totalorder %s146, %s147
      %p158 = scmp.eq.s32.totalorder %s28, 0
      %p159 = por %p157, %p158
      %p160 = scmp.ne.s32.totalorder %s146, %s147
      %p161 = scmp.eq.s32.totalorder %s29, 1
      %p162 = por %p160, %p161
      %p164 = scmp.ne.s32.totalorder %s147, %s163
      %p165 = scmp.eq.s32.totalorder %s29, 0
      %p166 = por %p164, %p165
      %s167 = ssub.s32 %s23, %s30
      %p168 = scmp.eq.s32.totalorder %s167, 0
      %s170 = sadd.s32 %s169, 1
      %s171 = scalar_select %p168, %s169, %s170
      %p174 = pneg %p168
      %p175 = scmp.eq.s32.totalorder %s23, 1
      %p176 = por %p174, %p175
      %p177 = scmp.ne.s32.totalorder %s169, %s172
      %p178 = scmp.eq.s32.totalorder %s23, 0
      %p179 = por %p177, %p178
      %p180 = scmp.ne.s32.totalorder %s169, %s172
      %p181 = scmp.eq.s32.totalorder %s28, 1
      %p182 = por %p180, %p181
      %p183 = scmp.ne.s32.totalorder %s172, %s173
      %p184 = scmp.eq.s32.totalorder %s28, 0
      %p185 = por %p183, %p184
      %p186 = scmp.ne.s32.totalorder %s172, %s173
      %p187 = scmp.eq.s32.totalorder %s29, 1
      %p188 = por %p186, %p187
      %p190 = scmp.ne.s32.totalorder %s173, %s189
      %p191 = scmp.eq.s32.totalorder %s29, 0
      %p192 = por %p190, %p191
      %p193 = scmp.le.s32.totalorder 1, %s23
      %p194 = scmp.lt.s32.totalorder %s23, 3
      %p195 = pnand %p193, %p194
      %p196 = pneg %p195
      // Predicated region
      $region9: #{tpu_custom_call.1} parent=5 // pred_check
        _
      $region10: #{tpu_custom_call.1} parent=5 // pred_check_branch
        %198 = sbr.rel (%p195) target = $region12
      $region11: #{tpu_custom_call.1} parent=5 // pred_region
        %s199 = ssub.s32 %s23, 1
        // Predicated region
        $region13: #{tpu_custom_call.1} parent=11 // pred_check
          %p200 = pneg %p70
        $region14: #{tpu_custom_call.1} parent=11 // pred_check_branch
          %202 = sbr.rel (%p200) target = $region16
        $region15: #{tpu_custom_call.1} parent=11 // pred_region
          %s204 = ssub.s32 4096, 4096
          %205 = vsyncadd [#allocation6], %s204
          %s206 = sshll.u32 [#allocation5], 4
          %s207 = int_to_ptr.vmem [resolvable:$true] %s206
          %212 = dma.hbm_to_vmem [thread:$0]  %s1, 4096, %s207, [#allocation6], 256, 256, 16
        $region16: #{tpu_custom_call.1} parent=11 // pred_fallthru
          _
        // Predicated region
        $region17: #{tpu_custom_call.1} parent=11 // pred_check
          %p213 = pneg %p91
        $region18: #{tpu_custom_call.1} parent=11 // pred_check_branch
          %215 = sbr.rel (%p213) target = $region20
        $region19: #{tpu_custom_call.1} parent=11 // pred_region
          _
        $region20: #{tpu_custom_call.1} parent=11 // pred_fallthru
          _
        // Predicated region
        $region21: #{tpu_custom_call.1} parent=11 // pred_check
          %p216 = pneg %p112
        $region22: #{tpu_custom_call.1} parent=11 // pred_check_branch
          %218 = sbr.rel (%p216) target = $region24
        $region23: #{tpu_custom_call.1} parent=11 // pred_region
          %s220 = ssub.s32 4096, 4096
          %221 = vsyncadd [#allocation6], %s220
          %s222 = sshll.u32 [#allocation7], 4
          %s223 = int_to_ptr.vmem [resolvable:$true] %s222
          %228 = dma.hbm_to_vmem [thread:$0]  %s3, 4096, %s223, [#allocation6], 64, 64, 4
        $region24: #{tpu_custom_call.1} parent=11 // pred_fallthru
          _
        // Predicated region
        $region25: #{tpu_custom_call.1} parent=11 // pred_check
          %p229 = pneg %p133
        $region26: #{tpu_custom_call.1} parent=11 // pred_check_branch
          %231 = sbr.rel (%p229) target = $region28
        $region27: #{tpu_custom_call.1} parent=11 // pred_region
          _
        $region28: #{tpu_custom_call.1} parent=11 // pred_fallthru
          _
      $region12: #{tpu_custom_call.1} parent=5 // pred_fallthru
        _
      %p232 = scmp.lt.s32.totalorder %s23, 2
      // Predicated region
      $region29: #{tpu_custom_call.1} parent=5 // pred_check
        %p233 = pneg %p232
      $region30: #{tpu_custom_call.1} parent=5 // pred_check_branch
        %235 = sbr.rel (%p233) target = $region32
      $region31: #{tpu_custom_call.1} parent=5 // pred_region
        // Predicated region
        $region33: #{tpu_custom_call.1} parent=31 // pred_check
          %p236 = pneg %p43
        $region34: #{tpu_custom_call.1} parent=31 // pred_check_branch
          %238 = sbr.rel (%p236) target = $region36
        $region35: #{tpu_custom_call.1} parent=31 // pred_region
          %s239 = sand.u32 %s33, 1
          %s240 = scalar_lea.sflag [#allocation3], %s239
          %s241 = sand.u32 %s33, 1
          %s242 = smul.addr %s241, 128
          %s243 = scalar_lea.vmem [#allocation2], %s242
          %s244 = smul.u32 16, %s23
          %s246 = ssub.s32 2048, 2048
          %247 = vsyncadd %s240, %s246
          %s248 = smul.addr %s244, 128
          %s249 = scalar_lea.hbm %s0, %s248
          %s250 = sshll.u32 %s243, 4
          %s251 = int_to_ptr.vmem [resolvable:$true] %s250
          %256 = dma.hbm_to_vmem [thread:$0]  %s249, 2048, %s251, %s240, 128, 128, 8
        $region36: #{tpu_custom_call.1} parent=31 // pred_fallthru
          _
      $region32: #{tpu_custom_call.1} parent=5 // pred_fallthru
        _
      %p257 = scmp.le.s32.totalorder 1, %s23
      %p258 = scmp.lt.s32.totalorder %s23, 3
      %p259 = pnand %p257, %p258
      %p260 = pneg %p259
      // Predicated region
      $region37: #{tpu_custom_call.1} parent=5 // pred_check
        _
      $region38: #{tpu_custom_call.1} parent=5 // pred_check_branch
        %262 = sbr.rel (%p259) target = $region40
      $region39: #{tpu_custom_call.1} parent=5 // pred_region
        %s263 = ssub.s32 %s23, 1
        %s264 = sand.u32 %s36, 1
        %s265 = scalar_lea.sflag [#allocation3], %s264
        %s266 = sand.u32 %s36, 1
        %s267 = smul.addr %s266, 128
        %s268 = scalar_lea.vmem [#allocation2], %s267
        // Predicated region
        $region41: #{tpu_custom_call.1} parent=39 // pred_check
          %p269 = pneg %p49
        $region42: #{tpu_custom_call.1} parent=39 // pred_check_branch
          %271 = sbr.rel (%p269) target = $region44
        $region43: #{tpu_custom_call.1} parent=39 // pred_region
          %272 = dma.done %s265, 2048
        $region44: #{tpu_custom_call.1} parent=39 // pred_fallthru
          _
        // Predicated region
        $region45: #{tpu_custom_call.1} parent=39 // pred_check
          %p273 = pneg %p70
        $region46: #{tpu_custom_call.1} parent=39 // pred_check_branch
          %275 = sbr.rel (%p273) target = $region48
        $region47: #{tpu_custom_call.1} parent=39 // pred_region
          %276 = dma.done [#allocation6], 4096
        $region48: #{tpu_custom_call.1} parent=39 // pred_fallthru
          _
        // Predicated region
        $region49: #{tpu_custom_call.1} parent=39 // pred_check
          %p277 = pneg %p112
        $region50: #{tpu_custom_call.1} parent=39 // pred_check_branch
          %279 = sbr.rel (%p277) target = $region52
        $region51: #{tpu_custom_call.1} parent=39 // pred_region
          %280 = dma.done [#allocation6], 4096
        $region52: #{tpu_custom_call.1} parent=39 // pred_fallthru
          _
        %s281 = sand.u32 %s36, 1
        %s282 = scalar_lea.sflag [#allocation3], %s281
        %s283 = sand.u32 %s36, 1
        %s284 = smul.addr %s283, 128
        %s285 = scalar_lea.vmem [#allocation2], %s284
        %p286 = pneg %p49
        %p287 = pneg %p46
        %p288 = pneg %p70
        %p289 = pneg %p67
        %p290 = pneg %p91
        %p291 = pneg %p88
        %p292 = pneg %p112
        %p293 = pneg %p109
        %p294 = pneg %p133
        %p295 = pneg %p130
        %p296 = pneg %p159
        %p297 = pneg %p156
        %s298 = sand.u32 %s146, 1
        %s299 = scalar_lea.sflag [#allocation4], %s298
        %s300 = sand.u32 %s146, 1
        %s301 = smul.addr %s300, 128
        %s302 = scalar_lea.vmem [#allocation8], %s301
        %p303 = pneg %p185
        %p304 = pneg %p182
        %s305 = sand.u32 %s172, 1
        %s306 = scalar_lea.sflag [#allocation10], %s305
        %s307 = sand.u32 %s172, 1
        %s308 = smul.addr %s307, 512
        %s309 = scalar_lea.vmem [#allocation9], %s308
        %s310 = smul.u32 16, %s28
        %s311 = smul.u32 16, %s28
        %s312 = smul.u32 16, %s28
        %v314 = vld [vmem:[%s268] sm:$0xff]
        %v315 = vld [vmem:[%s268 + $0x8] sm:$0xff]
        %v316 = vld [vmem:[%s268 + $0x10] sm:$0xff]
        %v317 = vld [vmem:[%s268 + $0x18] sm:$0xff]
        %v318 = vld [vmem:[%s268 + $0x20] sm:$0xff]
        %v319 = vld [vmem:[%s268 + $0x28] sm:$0xff]
        %v320 = vld [vmem:[%s268 + $0x30] sm:$0xff]
        %v321 = vld [vmem:[%s268 + $0x38] sm:$0xff]
        %v322 = vld [vmem:[%s268 + $0x40] sm:$0xff]
        %v323 = vld [vmem:[%s268 + $0x48] sm:$0xff]
        %v324 = vld [vmem:[%s268 + $0x50] sm:$0xff]
        %v325 = vld [vmem:[%s268 + $0x58] sm:$0xff]
        %v326 = vld [vmem:[%s268 + $0x60] sm:$0xff]
        %v327 = vld [vmem:[%s268 + $0x68] sm:$0xff]
        %v328 = vld [vmem:[%s268 + $0x70] sm:$0xff]
        %v329 = vld [vmem:[%s268 + $0x78] sm:$0xff]
        %v330 = vpack.c.bf16 %v315, %v314
        %v331 = vpack.c.bf16 %v317, %v316
        %v332 = vpack.c.bf16 %v319, %v318
        %v333 = vpack.c.bf16 %v321, %v320
        %v334 = vpack.c.bf16 %v323, %v322
        %v335 = vpack.c.bf16 %v325, %v324
        %v336 = vpack.c.bf16 %v327, %v326
        %v337 = vpack.c.bf16 %v329, %v328
        %v338 = vld [vmem:[#allocation5] sm:$0xff]
        %v339 = vld [vmem:[#allocation5 + $0x8] sm:$0xff]
        %v340 = vld [vmem:[#allocation5 + $0x10] sm:$0xff]
        %v341 = vld [vmem:[#allocation5 + $0x18] sm:$0xff]
        %v342 = vld [vmem:[#allocation5 + $0x20] sm:$0xff]
        %v343 = vld [vmem:[#allocation5 + $0x28] sm:$0xff]
        %v344 = vld [vmem:[#allocation5 + $0x30] sm:$0xff]
        %v345 = vld [vmem:[#allocation5 + $0x38] sm:$0xff]
        %v346 = vld [vmem:[#allocation5 + $0x40] sm:$0xff]
        %v347 = vld [vmem:[#allocation5 + $0x48] sm:$0xff]
        %v348 = vld [vmem:[#allocation5 + $0x50] sm:$0xff]
        %v349 = vld [vmem:[#allocation5 + $0x58] sm:$0xff]
        %v350 = vld [vmem:[#allocation5 + $0x60] sm:$0xff]
        %v351 = vld [vmem:[#allocation5 + $0x68] sm:$0xff]
        %v352 = vld [vmem:[#allocation5 + $0x70] sm:$0xff]
        %v353 = vld [vmem:[#allocation5 + $0x78] sm:$0xff]
        %v354 = vld [vmem:[#allocation5 + $0x80] sm:$0xff]
        %v355 = vld [vmem:[#allocation5 + $0x88] sm:$0xff]
        %v356 = vld [vmem:[#allocation5 + $0x90] sm:$0xff]
        %v357 = vld [vmem:[#allocation5 + $0x98] sm:$0xff]
        %v358 = vld [vmem:[#allocation5 + $0xa0] sm:$0xff]
        %v359 = vld [vmem:[#allocation5 + $0xa8] sm:$0xff]
        %v360 = vld [vmem:[#allocation5 + $0xb0] sm:$0xff]
        %v361 = vld [vmem:[#allocation5 + $0xb8] sm:$0xff]
        %v362 = vld [vmem:[#allocation5 + $0xc0] sm:$0xff]
        %v363 = vld [vmem:[#allocation5 + $0xc8] sm:$0xff]
        %v364 = vld [vmem:[#allocation5 + $0xd0] sm:$0xff]
        %v365 = vld [vmem:[#allocation5 + $0xd8] sm:$0xff]
        %v366 = vld [vmem:[#allocation5 + $0xe0] sm:$0xff]
        %v367 = vld [vmem:[#allocation5 + $0xe8] sm:$0xff]
        %v368 = vld [vmem:[#allocation5 + $0xf0] sm:$0xff]
        %v369 = vld [vmem:[#allocation5 + $0xf8] sm:$0xff]
        %v370 = vld [vmem:[%s2] sm:$0xf]
        %v372 = vlaneseq
        %v373 = vshrl.u32 %v372, 7
        %v374 = vsub.s32 0, %v373
        %v375 = vrot.slane %v370, %v374
        %v376 = vlaneseq
        %v377 = vshrl.u32 %v376, 7
        %v378 = vsub.s32 1, %v377
        %v379 = vrot.slane %v370, %v378
        %v380 = vlaneseq
        %v381 = vshrl.u32 %v380, 7
        %v382 = vsub.s32 2, %v381
        %v383 = vrot.slane %v370, %v382
        %v384 = vlaneseq
        %v385 = vshrl.u32 %v384, 7
        %v386 = vsub.s32 3, %v385
        %v387 = vrot.slane %v370, %v386
        %v424 = vunpack.c.l.b16 %v338
        %v425 = vunpack.c.h.b16 %v338
        %v426 = vunpack.c.l.b16 %v339
        %v427 = vunpack.c.h.b16 %v339
        %v428 = vunpack.c.l.b16 %v340
        %v429 = vunpack.c.h.b16 %v340
        %v430 = vunpack.c.l.b16 %v341
        %v431 = vunpack.c.h.b16 %v341
        %v432 = vunpack.c.l.b16 %v342
        %v433 = vunpack.c.h.b16 %v342
        %v434 = vunpack.c.l.b16 %v343
        %v435 = vunpack.c.h.b16 %v343
        %v436 = vunpack.c.l.b16 %v344
        %v437 = vunpack.c.h.b16 %v344
        %v438 = vunpack.c.l.b16 %v345
        %v439 = vunpack.c.h.b16 %v345
        %v440 = vunpack.c.l.b16 %v346
        %v441 = vunpack.c.h.b16 %v346
        %v442 = vunpack.c.l.b16 %v347
        %v443 = vunpack.c.h.b16 %v347
        %v444 = vunpack.c.l.b16 %v348
        %v445 = vunpack.c.h.b16 %v348
        %v446 = vunpack.c.l.b16 %v349
        %v447 = vunpack.c.h.b16 %v349
        %v448 = vunpack.c.l.b16 %v350
        %v449 = vunpack.c.h.b16 %v350
        %v450 = vunpack.c.l.b16 %v351
        %v451 = vunpack.c.h.b16 %v351
        %v452 = vunpack.c.l.b16 %v352
        %v453 = vunpack.c.h.b16 %v352
        %v454 = vunpack.c.l.b16 %v353
        %v455 = vunpack.c.h.b16 %v353
        %v456 = vunpack.c.l.b16 %v354
        %v457 = vunpack.c.h.b16 %v354
        %v458 = vunpack.c.l.b16 %v355
        %v459 = vunpack.c.h.b16 %v355
        %v460 = vunpack.c.l.b16 %v356
        %v461 = vunpack.c.h.b16 %v356
        %v462 = vunpack.c.l.b16 %v357
        %v463 = vunpack.c.h.b16 %v357
        %v464 = vunpack.c.l.b16 %v358
        %v465 = vunpack.c.h.b16 %v358
        %v466 = vunpack.c.l.b16 %v359
        %v467 = vunpack.c.h.b16 %v359
        %v468 = vunpack.c.l.b16 %v360
        %v469 = vunpack.c.h.b16 %v360
        %v470 = vunpack.c.l.b16 %v361
        %v471 = vunpack.c.h.b16 %v361
        %v472 = vunpack.c.l.b16 %v362
        %v473 = vunpack.c.h.b16 %v362
        %v474 = vunpack.c.l.b16 %v363
        %v475 = vunpack.c.h.b16 %v363
        %v476 = vunpack.c.l.b16 %v364
        %v477 = vunpack.c.h.b16 %v364
        %v478 = vunpack.c.l.b16 %v365
        %v479 = vunpack.c.h.b16 %v365
        %v480 = vunpack.c.l.b16 %v366
        %v481 = vunpack.c.h.b16 %v366
        %v482 = vunpack.c.l.b16 %v367
        %v483 = vunpack.c.h.b16 %v367
        %v484 = vunpack.c.l.b16 %v368
        %v485 = vunpack.c.h.b16 %v368
        %v486 = vunpack.c.l.b16 %v369
        %v487 = vunpack.c.h.b16 %v369
        %v488 = vpack.c.b16 %v428, %v424
        %v489 = vpack.c.b16 %v429, %v425
        %v490 = vpack.c.b16 %v430, %v426
        %v491 = vpack.c.b16 %v431, %v427
        %v492 = vpack.c.b16 %v436, %v432
        %v493 = vpack.c.b16 %v437, %v433
        %v494 = vpack.c.b16 %v438, %v434
        %v495 = vpack.c.b16 %v439, %v435
        %v496 = vpack.c.b16 %v444, %v440
        %v497 = vpack.c.b16 %v445, %v441
        %v498 = vpack.c.b16 %v446, %v442
        %v499 = vpack.c.b16 %v447, %v443
        %v500 = vpack.c.b16 %v452, %v448
        %v501 = vpack.c.b16 %v453, %v449
        %v502 = vpack.c.b16 %v454, %v450
        %v503 = vpack.c.b16 %v455, %v451
        %v504 = vpack.c.b16 %v460, %v456
        %v505 = vpack.c.b16 %v461, %v457
        %v506 = vpack.c.b16 %v462, %v458
        %v507 = vpack.c.b16 %v463, %v459
        %v508 = vpack.c.b16 %v468, %v464
        %v509 = vpack.c.b16 %v469, %v465
        %v510 = vpack.c.b16 %v470, %v466
        %v511 = vpack.c.b16 %v471, %v467
        %v512 = vpack.c.b16 %v476, %v472
        %v513 = vpack.c.b16 %v477, %v473
        %v514 = vpack.c.b16 %v478, %v474
        %v515 = vpack.c.b16 %v479, %v475
        %v516 = vpack.c.b16 %v484, %v480
        %v517 = vpack.c.b16 %v485, %v481
        %v518 = vpack.c.b16 %v486, %v482
        %v519 = vpack.c.b16 %v487, %v483
        %552 = vmatprep.subr.bf16.mxu0 %v489
        %553 = vmatpush1.bf16.msra.mxu0 %v488
        %554 = vmatprep.subr.bf16.mxu0 %v493
        %555 = vmatpush1.bf16.msra.mxu0 %v492
        %556 = vmatprep.subr.bf16.mxu0 %v497
        %557 = vmatpush1.bf16.msra.mxu0 %v496
        %558 = vmatprep.subr.bf16.mxu0 %v501
        %559 = vmatpush1.bf16.msra.mxu0 %v500
        %560 = vmatprep.subr.bf16.mxu0 %v505
        %561 = vmatpush1.bf16.msra.mxu0 %v504
        %562 = vmatprep.subr.bf16.mxu0 %v509
        %563 = vmatpush1.bf16.msra.mxu0 %v508
        %564 = vmatprep.subr.bf16.mxu0 %v513
        %565 = vmatpush1.bf16.msra.mxu0 %v512
        %566 = vmatprep.subr.bf16.mxu0 %v517
        %567 = vmatpush1.bf16.msra.mxu0 %v516
        %568 = vmatprep.subr.bf16.mxu0 0
        %569 = vmatpush1.bf16.msra.mxu0 0
        %570 = vmatprep.subr.bf16.mxu0 0
        %571 = vmatpush1.bf16.msra.mxu0 0
        %572 = vmatprep.subr.bf16.mxu0 0
        %573 = vmatpush1.bf16.msra.mxu0 0
        %574 = vmatprep.subr.bf16.mxu0 0
        %575 = vmatpush1.bf16.msra.mxu0 0
        %576 = vmatprep.subr.bf16.mxu0 0
        %577 = vmatpush1.bf16.msra.mxu0 0
        %578 = vmatprep.subr.bf16.mxu0 0
        %579 = vmatpush1.bf16.msra.mxu0 0
        %580 = vmatprep.subr.bf16.mxu0 0
        %581 = vmatpush1.bf16.msra.mxu0 0
        %582 = vmatprep.subr.bf16.mxu0 0
        %583 = vmatpush1.bf16.msra.mxu0 0
        %584 = vmatprep.mubr.bf16.mxu0 0
        %585 = vmatmul.mubr.bf16.gmra.mrb[0].mxu0 %v330
        %v586 = vpop.f32.mrb[0].mxu0
        %v587 = vadd.f32 %v375, %v586
        %v588 = vpop.f32.mrb[0].mxu0
        %v589 = vadd.f32 %v379, %v588
        %v590 = vpop.f32.mrb[0].mxu0
        %v591 = vadd.f32 %v375, %v590
        %v592 = vpop.f32.mrb[0].mxu0
        %v593 = vadd.f32 %v379, %v592
        %594 = vmatprep.mubr.bf16.mxu0 0
        %595 = vmatmul.mubr.bf16.gmra.mrb[0].mxu0 %v331
        %v596 = vpop.f32.mrb[0].mxu0
        %v597 = vadd.f32 %v375, %v596
        %v598 = vpop.f32.mrb[0].mxu0
        %v599 = vadd.f32 %v379, %v598
        %v600 = vpop.f32.mrb[0].mxu0
        %v601 = vadd.f32 %v375, %v600
        %v602 = vpop.f32.mrb[0].mxu0
        %v603 = vadd.f32 %v379, %v602
        %604 = vmatprep.mubr.bf16.mxu0 0
        %605 = vmatmul.mubr.bf16.gmra.mrb[0].mxu0 %v332
        %v606 = vpop.f32.mrb[0].mxu0
        %v607 = vadd.f32 %v375, %v606
        %v608 = vpop.f32.mrb[0].mxu0
        %v609 = vadd.f32 %v379, %v608
        %v610 = vpop.f32.mrb[0].mxu0
        %v611 = vadd.f32 %v375, %v610
        %v612 = vpop.f32.mrb[0].mxu0
        %v613 = vadd.f32 %v379, %v612
        %614 = vmatprep.mubr.bf16.mxu0 0
        %615 = vmatmul.mubr.bf16.gmra.mrb[0].mxu0 %v333
        %v616 = vpop.f32.mrb[0].mxu0
        %v617 = vadd.f32 %v375, %v616
        %v618 = vpop.f32.mrb[0].mxu0
        %v619 = vadd.f32 %v379, %v618
        %v620 = vpop.f32.mrb[0].mxu0
        %v621 = vadd.f32 %v375, %v620
        %v622 = vpop.f32.mrb[0].mxu0
        %v623 = vadd.f32 %v379, %v622
        %624 = vmatprep.mubr.bf16.mxu0 0
        %625 = vmatmul.mubr.bf16.gmra.mrb[0].mxu0 %v334
        %v626 = vpop.f32.mrb[0].mxu0
        %v627 = vadd.f32 %v375, %v626
        %v628 = vpop.f32.mrb[0].mxu0
        %v629 = vadd.f32 %v379, %v628
        %v630 = vpop.f32.mrb[0].mxu0
        %v631 = vadd.f32 %v375, %v630
        %v632 = vpop.f32.mrb[0].mxu0
        %v633 = vadd.f32 %v379, %v632
        %634 = vmatprep.mubr.bf16.mxu0 0
        %635 = vmatmul.mubr.bf16.gmra.mrb[0].mxu0 %v335
        %v636 = vpop.f32.mrb[0].mxu0
        %v637 = vadd.f32 %v375, %v636
        %v638 = vpop.f32.mrb[0].mxu0
        %v639 = vadd.f32 %v379, %v638
        %v640 = vpop.f32.mrb[0].mxu0
        %v641 = vadd.f32 %v375, %v640
        %v642 = vpop.f32.mrb[0].mxu0
        %v643 = vadd.f32 %v379, %v642
        %644 = vmatprep.mubr.bf16.mxu0 0
        %645 = vmatmul.mubr.bf16.gmra.mrb[0].mxu0 %v336
        %v646 = vpop.f32.mrb[0].mxu0
        %v647 = vadd.f32 %v375, %v646
        %v648 = vpop.f32.mrb[0].mxu0
        %v649 = vadd.f32 %v379, %v648
        %v650 = vpop.f32.mrb[0].mxu0
        %v651 = vadd.f32 %v375, %v650
        %v652 = vpop.f32.mrb[0].mxu0
        %v653 = vadd.f32 %v379, %v652
        %654 = vmatprep.mubr.bf16.mxu0 0
        %655 = vmatmul.mubr.bf16.gmra.mrb[0].mxu0 %v337
        %v656 = vpop.f32.mrb[0].mxu0
        %v657 = vadd.f32 %v375, %v656
        %v658 = vpop.f32.mrb[0].mxu0
        %v659 = vadd.f32 %v379, %v658
        %v660 = vpop.f32.mrb[0].mxu0
        %v661 = vadd.f32 %v375, %v660
        %v662 = vpop.f32.mrb[0].mxu0
        %v663 = vadd.f32 %v379, %v662
        %664 = vdwg.mxu0
        %665 = vmatprep.subr.bf16.mxu0 %v491
        %666 = vmatpush1.bf16.msra.mxu0 %v490
        %667 = vmatprep.subr.bf16.mxu0 %v495
        %668 = vmatpush1.bf16.msra.mxu0 %v494
        %669 = vmatprep.subr.bf16.mxu0 %v499
        %670 = vmatpush1.bf16.msra.mxu0 %v498
        %671 = vmatprep.subr.bf16.mxu0 %v503
        %672 = vmatpush1.bf16.msra.mxu0 %v502
        %673 = vmatprep.subr.bf16.mxu0 %v507
        %674 = vmatpush1.bf16.msra.mxu0 %v506
        %675 = vmatprep.subr.bf16.mxu0 %v511
        %676 = vmatpush1.bf16.msra.mxu0 %v510
        %677 = vmatprep.subr.bf16.mxu0 %v515
        %678 = vmatpush1.bf16.msra.mxu0 %v514
        %679 = vmatprep.subr.bf16.mxu0 %v519
        %680 = vmatpush1.bf16.msra.mxu0 %v518
        %681 = vmatprep.subr.bf16.mxu0 0
        %682 = vmatpush1.bf16.msra.mxu0 0
        %683 = vmatprep.subr.bf16.mxu0 0
        %684 = vmatpush1.bf16.msra.mxu0 0
        %685 = vmatprep.subr.bf16.mxu0 0
        %686 = vmatpush1.bf16.msra.mxu0 0
        %687 = vmatprep.subr.bf16.mxu0 0
        %688 = vmatpush1.bf16.msra.mxu0 0
        %689 = vmatprep.subr.bf16.mxu0 0
        %690 = vmatpush1.bf16.msra.mxu0 0
        %691 = vmatprep.subr.bf16.mxu0 0
        %692 = vmatpush1.bf16.msra.mxu0 0
        %693 = vmatprep.subr.bf16.mxu0 0
        %694 = vmatpush1.bf16.msra.mxu0 0
        %695 = vmatprep.subr.bf16.mxu0 0
        %696 = vmatpush1.bf16.msra.mxu0 0
        %697 = vmatprep.mubr.bf16.mxu0 0
        %698 = vmatmul.mubr.bf16.gmra.mrb[0].mxu0 %v330
        %v699 = vpop.f32.mrb[0].mxu0
        %v700 = vadd.f32 %v383, %v699
        %v701 = vpop.f32.mrb[0].mxu0
        %v702 = vadd.f32 %v387, %v701
        %v703 = vpop.f32.mrb[0].mxu0
        %v704 = vadd.f32 %v383, %v703
        %v705 = vpop.f32.mrb[0].mxu0
        %v706 = vadd.f32 %v387, %v705
        %707 = vmatprep.mubr.bf16.mxu0 0
        %708 = vmatmul.mubr.bf16.gmra.mrb[0].mxu0 %v331
        %v709 = vpop.f32.mrb[0].mxu0
        %v710 = vadd.f32 %v383, %v709
        %v711 = vpop.f32.mrb[0].mxu0
        %v712 = vadd.f32 %v387, %v711
        %v713 = vpop.f32.mrb[0].mxu0
        %v714 = vadd.f32 %v383, %v713
        %v715 = vpop.f32.mrb[0].mxu0
        %v716 = vadd.f32 %v387, %v715
        %717 = vmatprep.mubr.bf16.mxu0 0
        %718 = vmatmul.mubr.bf16.gmra.mrb[0].mxu0 %v332
        %v719 = vpop.f32.mrb[0].mxu0
        %v720 = vadd.f32 %v383, %v719
        %v721 = vpop.f32.mrb[0].mxu0
        %v722 = vadd.f32 %v387, %v721
        %v723 = vpop.f32.mrb[0].mxu0
        %v724 = vadd.f32 %v383, %v723
        %v725 = vpop.f32.mrb[0].mxu0
        %v726 = vadd.f32 %v387, %v725
        %727 = vmatprep.mubr.bf16.mxu0 0
        %728 = vmatmul.mubr.bf16.gmra.mrb[0].mxu0 %v333
        %v729 = vpop.f32.mrb[0].mxu0
        %v730 = vadd.f32 %v383, %v729
        %v731 = vpop.f32.mrb[0].mxu0
        %v732 = vadd.f32 %v387, %v731
        %v733 = vpop.f32.mrb[0].mxu0
        %v734 = vadd.f32 %v383, %v733
        %v735 = vpop.f32.mrb[0].mxu0
        %v736 = vadd.f32 %v387, %v735
        %737 = vmatprep.mubr.bf16.mxu0 0
        %738 = vmatmul.mubr.bf16.gmra.mrb[0].mxu0 %v334
        %v739 = vpop.f32.mrb[0].mxu0
        %v740 = vadd.f32 %v383, %v739
        %v741 = vpop.f32.mrb[0].mxu0
        %v742 = vadd.f32 %v387, %v741
        %v743 = vpop.f32.mrb[0].mxu0
        %v744 = vadd.f32 %v383, %v743
        %v745 = vpop.f32.mrb[0].mxu0
        %v746 = vadd.f32 %v387, %v745
        %747 = vmatprep.mubr.bf16.mxu0 0
        %748 = vmatmul.mubr.bf16.gmra.mrb[0].mxu0 %v335
        %v749 = vpop.f32.mrb[0].mxu0
        %v750 = vadd.f32 %v383, %v749
        %v751 = vpop.f32.mrb[0].mxu0
        %v752 = vadd.f32 %v387, %v751
        %v753 = vpop.f32.mrb[0].mxu0
        %v754 = vadd.f32 %v383, %v753
        %v755 = vpop.f32.mrb[0].mxu0
        %v756 = vadd.f32 %v387, %v755
        %757 = vmatprep.mubr.bf16.mxu0 0
        %758 = vmatmul.mubr.bf16.gmra.mrb[0].mxu0 %v336
        %v759 = vpop.f32.mrb[0].mxu0
        %v760 = vadd.f32 %v383, %v759
        %v761 = vpop.f32.mrb[0].mxu0
        %v762 = vadd.f32 %v387, %v761
        %v763 = vpop.f32.mrb[0].mxu0
        %v764 = vadd.f32 %v383, %v763
        %v765 = vpop.f32.mrb[0].mxu0
        %v766 = vadd.f32 %v387, %v765
        %767 = vmatprep.mubr.bf16.mxu0 0
        %768 = vmatmul.mubr.bf16.gmra.mrb[0].mxu0 %v337
        %v769 = vpop.f32.mrb[0].mxu0
        %v770 = vadd.f32 %v383, %v769
        %v771 = vpop.f32.mrb[0].mxu0
        %v772 = vadd.f32 %v387, %v771
        %v773 = vpop.f32.mrb[0].mxu0
        %v774 = vadd.f32 %v383, %v773
        %v775 = vpop.f32.mrb[0].mxu0
        %v776 = vadd.f32 %v387, %v775
        %777 = vdwg.mxu0
        %v778 = vmax.f32 %v587, 0.0
        %v779 = vmax.f32 %v589, 0.0
        %v780 = vmax.f32 %v700, 0.0
        %v781 = vmax.f32 %v702, 0.0
        %v782 = vmax.f32 %v591, 0.0
        %v783 = vmax.f32 %v593, 0.0
        %v784 = vmax.f32 %v704, 0.0
        %v785 = vmax.f32 %v706, 0.0
        %v786 = vmax.f32 %v597, 0.0
        %v787 = vmax.f32 %v599, 0.0
        %v788 = vmax.f32 %v710, 0.0
        %v789 = vmax.f32 %v712, 0.0
        %v790 = vmax.f32 %v601, 0.0
        %v791 = vmax.f32 %v603, 0.0
        %v792 = vmax.f32 %v714, 0.0
        %v793 = vmax.f32 %v716, 0.0
        %v794 = vmax.f32 %v607, 0.0
        %v795 = vmax.f32 %v609, 0.0
        %v796 = vmax.f32 %v720, 0.0
        %v797 = vmax.f32 %v722, 0.0
        %v798 = vmax.f32 %v611, 0.0
        %v799 = vmax.f32 %v613, 0.0
        %v800 = vmax.f32 %v724, 0.0
        %v801 = vmax.f32 %v726, 0.0
        %v802 = vmax.f32 %v617, 0.0
        %v803 = vmax.f32 %v619, 0.0
        %v804 = vmax.f32 %v730, 0.0
        %v805 = vmax.f32 %v732, 0.0
        %v806 = vmax.f32 %v621, 0.0
        %v807 = vmax.f32 %v623, 0.0
        %v808 = vmax.f32 %v734, 0.0
        %v809 = vmax.f32 %v736, 0.0
        %v810 = vmax.f32 %v627, 0.0
        %v811 = vmax.f32 %v629, 0.0
        %v812 = vmax.f32 %v740, 0.0
        %v813 = vmax.f32 %v742, 0.0
        %v814 = vmax.f32 %v631, 0.0
        %v815 = vmax.f32 %v633, 0.0
        %v816 = vmax.f32 %v744, 0.0
        %v817 = vmax.f32 %v746, 0.0
        %v818 = vmax.f32 %v637, 0.0
        %v819 = vmax.f32 %v639, 0.0
        %v820 = vmax.f32 %v750, 0.0
        %v821 = vmax.f32 %v752, 0.0
        %v822 = vmax.f32 %v641, 0.0
        %v823 = vmax.f32 %v643, 0.0
        %v824 = vmax.f32 %v754, 0.0
        %v825 = vmax.f32 %v756, 0.0
        %v826 = vmax.f32 %v647, 0.0
        %v827 = vmax.f32 %v649, 0.0
        %v828 = vmax.f32 %v760, 0.0
        %v829 = vmax.f32 %v762, 0.0
        %v830 = vmax.f32 %v651, 0.0
        %v831 = vmax.f32 %v653, 0.0
        %v832 = vmax.f32 %v764, 0.0
        %v833 = vmax.f32 %v766, 0.0
        %v834 = vmax.f32 %v657, 0.0
        %v835 = vmax.f32 %v659, 0.0
        %v836 = vmax.f32 %v770, 0.0
        %v837 = vmax.f32 %v772, 0.0
        %v838 = vmax.f32 %v661, 0.0
        %v839 = vmax.f32 %v663, 0.0
        %v840 = vmax.f32 %v774, 0.0
        %v841 = vmax.f32 %v776, 0.0
        %v842 = vpack.c.bf16 %v782, %v778
        %v843 = vpack.c.bf16 %v783, %v779
        %v844 = vpack.c.bf16 %v784, %v780
        %v845 = vpack.c.bf16 %v785, %v781
        %v846 = vpack.c.bf16 %v790, %v786
        %v847 = vpack.c.bf16 %v791, %v787
        %v848 = vpack.c.bf16 %v792, %v788
        %v849 = vpack.c.bf16 %v793, %v789
        %v850 = vpack.c.bf16 %v798, %v794
        %v851 = vpack.c.bf16 %v799, %v795
        %v852 = vpack.c.bf16 %v800, %v796
        %v853 = vpack.c.bf16 %v801, %v797
        %v854 = vpack.c.bf16 %v806, %v802
        %v855 = vpack.c.bf16 %v807, %v803
        %v856 = vpack.c.bf16 %v808, %v804
        %v857 = vpack.c.bf16 %v809, %v805
        %v858 = vpack.c.bf16 %v814, %v810
        %v859 = vpack.c.bf16 %v815, %v811
        %v860 = vpack.c.bf16 %v816, %v812
        %v861 = vpack.c.bf16 %v817, %v813
        %v862 = vpack.c.bf16 %v822, %v818
        %v863 = vpack.c.bf16 %v823, %v819
        %v864 = vpack.c.bf16 %v824, %v820
        %v865 = vpack.c.bf16 %v825, %v821
        %v866 = vpack.c.bf16 %v830, %v826
        %v867 = vpack.c.bf16 %v831, %v827
        %v868 = vpack.c.bf16 %v832, %v828
        %v869 = vpack.c.bf16 %v833, %v829
        %v870 = vpack.c.bf16 %v838, %v834
        %v871 = vpack.c.bf16 %v839, %v835
        %v872 = vpack.c.bf16 %v840, %v836
        %v873 = vpack.c.bf16 %v841, %v837
        %v874 = vld [vmem:[#allocation7] sm:$0xf]
        %v875 = vld [vmem:[#allocation7 + $0x4] sm:$0xf]
        %v876 = vld [vmem:[#allocation7 + $0x8] sm:$0xf]
        %v877 = vld [vmem:[#allocation7 + $0xc] sm:$0xf]
        %v878 = vld [vmem:[#allocation7 + $0x10] sm:$0xf]
        %v879 = vld [vmem:[#allocation7 + $0x14] sm:$0xf]
        %v880 = vld [vmem:[#allocation7 + $0x18] sm:$0xf]
        %v881 = vld [vmem:[#allocation7 + $0x1c] sm:$0xf]
        %v882 = vld [vmem:[#allocation7 + $0x20] sm:$0xf]
        %v883 = vld [vmem:[#allocation7 + $0x24] sm:$0xf]
        %v884 = vld [vmem:[#allocation7 + $0x28] sm:$0xf]
        %v885 = vld [vmem:[#allocation7 + $0x2c] sm:$0xf]
        %v886 = vld [vmem:[#allocation7 + $0x30] sm:$0xf]
        %v887 = vld [vmem:[#allocation7 + $0x34] sm:$0xf]
        %v888 = vld [vmem:[#allocation7 + $0x38] sm:$0xf]
        %v889 = vld [vmem:[#allocation7 + $0x3c] sm:$0xf]
        %v890 = vld [vmem:[#allocation7 + $0x40] sm:$0xf]
        %v891 = vld [vmem:[#allocation7 + $0x44] sm:$0xf]
        %v892 = vld [vmem:[#allocation7 + $0x48] sm:$0xf]
        %v893 = vld [vmem:[#allocation7 + $0x4c] sm:$0xf]
        %v894 = vld [vmem:[#allocation7 + $0x50] sm:$0xf]
        %v895 = vld [vmem:[#allocation7 + $0x54] sm:$0xf]
        %v896 = vld [vmem:[#allocation7 + $0x58] sm:$0xf]
        %v897 = vld [vmem:[#allocation7 + $0x5c] sm:$0xf]
        %v898 = vld [vmem:[#allocation7 + $0x60] sm:$0xf]
        %v899 = vld [vmem:[#allocation7 + $0x64] sm:$0xf]
        %v900 = vld [vmem:[#allocation7 + $0x68] sm:$0xf]
        %v901 = vld [vmem:[#allocation7 + $0x6c] sm:$0xf]
        %v902 = vld [vmem:[#allocation7 + $0x70] sm:$0xf]
        %v903 = vld [vmem:[#allocation7 + $0x74] sm:$0xf]
        %v904 = vld [vmem:[#allocation7 + $0x78] sm:$0xf]
        %v905 = vld [vmem:[#allocation7 + $0x7c] sm:$0xf]
        %v906 = vld [vmem:[#allocation7 + $0x80] sm:$0xf]
        %v907 = vld [vmem:[#allocation7 + $0x84] sm:$0xf]
        %v908 = vld [vmem:[#allocation7 + $0x88] sm:$0xf]
        %v909 = vld [vmem:[#allocation7 + $0x8c] sm:$0xf]
        %v910 = vld [vmem:[#allocation7 + $0x90] sm:$0xf]
        %v911 = vld [vmem:[#allocation7 + $0x94] sm:$0xf]
        %v912 = vld [vmem:[#allocation7 + $0x98] sm:$0xf]
        %v913 = vld [vmem:[#allocation7 + $0x9c] sm:$0xf]
        %v914 = vld [vmem:[#allocation7 + $0xa0] sm:$0xf]
        %v915 = vld [vmem:[#allocation7 + $0xa4] sm:$0xf]
        %v916 = vld [vmem:[#allocation7 + $0xa8] sm:$0xf]
        %v917 = vld [vmem:[#allocation7 + $0xac] sm:$0xf]
        %v918 = vld [vmem:[#allocation7 + $0xb0] sm:$0xf]
        %v919 = vld [vmem:[#allocation7 + $0xb4] sm:$0xf]
        %v920 = vld [vmem:[#allocation7 + $0xb8] sm:$0xf]
        %v921 = vld [vmem:[#allocation7 + $0xbc] sm:$0xf]
        %v922 = vld [vmem:[#allocation7 + $0xc0] sm:$0xf]
        %v923 = vld [vmem:[#allocation7 + $0xc4] sm:$0xf]
        %v924 = vld [vmem:[#allocation7 + $0xc8] sm:$0xf]
        %v925 = vld [vmem:[#allocation7 + $0xcc] sm:$0xf]
        %v926 = vld [vmem:[#allocation7 + $0xd0] sm:$0xf]
        %v927 = vld [vmem:[#allocation7 + $0xd4] sm:$0xf]
        %v928 = vld [vmem:[#allocation7 + $0xd8] sm:$0xf]
        %v929 = vld [vmem:[#allocation7 + $0xdc] sm:$0xf]
        %v930 = vld [vmem:[#allocation7 + $0xe0] sm:$0xf]
        %v931 = vld [vmem:[#allocation7 + $0xe4] sm:$0xf]
        %v932 = vld [vmem:[#allocation7 + $0xe8] sm:$0xf]
        %v933 = vld [vmem:[#allocation7 + $0xec] sm:$0xf]
        %v934 = vld [vmem:[#allocation7 + $0xf0] sm:$0xf]
        %v935 = vld [vmem:[#allocation7 + $0xf4] sm:$0xf]
        %v936 = vld [vmem:[#allocation7 + $0xf8] sm:$0xf]
        %v937 = vld [vmem:[#allocation7 + $0xfc] sm:$0xf]
        %v938 = vld [vmem:[%s4] sm:$0x1]
        %v940 = vlaneseq
        %v941 = vshrl.u32 %v940, 7
        %v942 = vsub.s32 0, %v941
        %v943 = vrot.slane %v938, %v942
        %v1009 = vunpack.c.l.b16 %v874
        %v1010 = vunpack.c.l.b16 %v875
        %v1011 = vunpack.c.l.b16 %v876
        %v1012 = vunpack.c.l.b16 %v877
        %v1013 = vunpack.c.l.b16 %v878
        %v1014 = vunpack.c.l.b16 %v879
        %v1015 = vunpack.c.l.b16 %v880
        %v1016 = vunpack.c.l.b16 %v881
        %v1017 = vunpack.c.l.b16 %v882
        %v1018 = vunpack.c.l.b16 %v883
        %v1019 = vunpack.c.l.b16 %v884
        %v1020 = vunpack.c.l.b16 %v885
        %v1021 = vunpack.c.l.b16 %v886
        %v1022 = vunpack.c.l.b16 %v887
        %v1023 = vunpack.c.l.b16 %v888
        %v1024 = vunpack.c.l.b16 %v889
        %v1025 = vunpack.c.l.b16 %v890
        %v1026 = vunpack.c.l.b16 %v891
        %v1027 = vunpack.c.l.b16 %v892
        %v1028 = vunpack.c.l.b16 %v893
        %v1029 = vunpack.c.l.b16 %v894
        %v1030 = vunpack.c.l.b16 %v895
        %v1031 = vunpack.c.l.b16 %v896
        %v1032 = vunpack.c.l.b16 %v897
        %v1033 = vunpack.c.l.b16 %v898
        %v1034 = vunpack.c.l.b16 %v899
        %v1035 = vunpack.c.l.b16 %v900
        %v1036 = vunpack.c.l.b16 %v901
        %v1037 = vunpack.c.l.b16 %v902
        %v1038 = vunpack.c.l.b16 %v903
        %v1039 = vunpack.c.l.b16 %v904
        %v1040 = vunpack.c.l.b16 %v905
        %v1041 = vunpack.c.l.b16 %v906
        %v1042 = vunpack.c.l.b16 %v907
        %v1043 = vunpack.c.l.b16 %v908
        %v1044 = vunpack.c.l.b16 %v909
        %v1045 = vunpack.c.l.b16 %v910
        %v1046 = vunpack.c.l.b16 %v911
        %v1047 = vunpack.c.l.b16 %v912
        %v1048 = vunpack.c.l.b16 %v913
        %v1049 = vunpack.c.l.b16 %v914
        %v1050 = vunpack.c.l.b16 %v915
        %v1051 = vunpack.c.l.b16 %v916
        %v1052 = vunpack.c.l.b16 %v917
        %v1053 = vunpack.c.l.b16 %v918
        %v1054 = vunpack.c.l.b16 %v919
        %v1055 = vunpack.c.l.b16 %v920
        %v1056 = vunpack.c.l.b16 %v921
        %v1057 = vunpack.c.l.b16 %v922
        %v1058 = vunpack.c.l.b16 %v923
        %v1059 = vunpack.c.l.b16 %v924
        %v1060 = vunpack.c.l.b16 %v925
        %v1061 = vunpack.c.l.b16 %v926
        %v1062 = vunpack.c.l.b16 %v927
        %v1063 = vunpack.c.l.b16 %v928
        %v1064 = vunpack.c.l.b16 %v929
        %v1065 = vunpack.c.l.b16 %v930
        %v1066 = vunpack.c.l.b16 %v931
        %v1067 = vunpack.c.l.b16 %v932
        %v1068 = vunpack.c.l.b16 %v933
        %v1069 = vunpack.c.l.b16 %v934
        %v1070 = vunpack.c.l.b16 %v935
        %v1071 = vunpack.c.l.b16 %v936
        %v1072 = vunpack.c.l.b16 %v937
        %v1073 = vpack.c.b16 %v1010, %v1009
        %v1074 = vpack.c.b16 %v1012, %v1011
        %v1075 = vpack.c.b16 %v1014, %v1013
        %v1076 = vpack.c.b16 %v1016, %v1015
        %v1077 = vpack.c.b16 %v1018, %v1017
        %v1078 = vpack.c.b16 %v1020, %v1019
        %v1079 = vpack.c.b16 %v1022, %v1021
        %v1080 = vpack.c.b16 %v1024, %v1023
        %v1081 = vpack.c.b16 %v1026, %v1025
        %v1082 = vpack.c.b16 %v1028, %v1027
        %v1083 = vpack.c.b16 %v1030, %v1029
        %v1084 = vpack.c.b16 %v1032, %v1031
        %v1085 = vpack.c.b16 %v1034, %v1033
        %v1086 = vpack.c.b16 %v1036, %v1035
        %v1087 = vpack.c.b16 %v1038, %v1037
        %v1088 = vpack.c.b16 %v1040, %v1039
        %v1089 = vpack.c.b16 %v1042, %v1041
        %v1090 = vpack.c.b16 %v1044, %v1043
        %v1091 = vpack.c.b16 %v1046, %v1045
        %v1092 = vpack.c.b16 %v1048, %v1047
        %v1093 = vpack.c.b16 %v1050, %v1049
        %v1094 = vpack.c.b16 %v1052, %v1051
        %v1095 = vpack.c.b16 %v1054, %v1053
        %v1096 = vpack.c.b16 %v1056, %v1055
        %v1097 = vpack.c.b16 %v1058, %v1057
        %v1098 = vpack.c.b16 %v1060, %v1059
        %v1099 = vpack.c.b16 %v1062, %v1061
        %v1100 = vpack.c.b16 %v1064, %v1063
        %v1101 = vpack.c.b16 %v1066, %v1065
        %v1102 = vpack.c.b16 %v1068, %v1067
        %v1103 = vpack.c.b16 %v1070, %v1069
        %v1104 = vpack.c.b16 %v1072, %v1071
        %1137 = vmatprep.subr.bf16.mxu0 0
        %1138 = vmatpush1.bf16.msra.mxu0 %v1073
        %1139 = vmatprep.subr.bf16.mxu0 0
        %1140 = vmatpush1.bf16.msra.mxu0 %v1074
        %1141 = vmatprep.subr.bf16.mxu0 0
        %1142 = vmatpush1.bf16.msra.mxu0 %v1075
        %1143 = vmatprep.subr.bf16.mxu0 0
        %1144 = vmatpush1.bf16.msra.mxu0 %v1076
        %1145 = vmatprep.subr.bf16.mxu0 0
        %1146 = vmatpush1.bf16.msra.mxu0 %v1077
        %1147 = vmatprep.subr.bf16.mxu0 0
        %1148 = vmatpush1.bf16.msra.mxu0 %v1078
        %1149 = vmatprep.subr.bf16.mxu0 0
        %1150 = vmatpush1.bf16.msra.mxu0 %v1079
        %1151 = vmatprep.subr.bf16.mxu0 0
        %1152 = vmatpush1.bf16.msra.mxu0 %v1080
        %1153 = vmatprep.subr.bf16.mxu0 0
        %1154 = vmatpush1.bf16.msra.mxu0 %v1081
        %1155 = vmatprep.subr.bf16.mxu0 0
        %1156 = vmatpush1.bf16.msra.mxu0 %v1082
        %1157 = vmatprep.subr.bf16.mxu0 0
        %1158 = vmatpush1.bf16.msra.mxu0 %v1083
        %1159 = vmatprep.subr.bf16.mxu0 0
        %1160 = vmatpush1.bf16.msra.mxu0 %v1084
        %1161 = vmatprep.subr.bf16.mxu0 0
        %1162 = vmatpush1.bf16.msra.mxu0 %v1085
        %1163 = vmatprep.subr.bf16.mxu0 0
        %1164 = vmatpush1.bf16.msra.mxu0 %v1086
        %1165 = vmatprep.subr.bf16.mxu0 0
        %1166 = vmatpush1.bf16.msra.mxu0 %v1087
        %1167 = vmatprep.subr.bf16.mxu0 0
        %1168 = vmatpush1.bf16.msra.mxu0 %v1088
        %1169 = vmatprep.mubr.bf16.mxu0 %v843
        %1170 = vmatmul.mubr.bf16.gmra.mrb[0].mxu0 %v842
        %v1171 = vpop.f32.mrb[0].mxu0
        %v1172 = vadd.f32 %v943, %v1171
        %v1173 = vpop.f32.mrb[0].mxu0
        %v1174 = vpop.f32.mrb[0].mxu0
        %v1175 = vadd.f32 %v943, %v1174
        %v1176 = vpop.f32.mrb[0].mxu0
        %1177 = vmatprep.mubr.bf16.mxu0 %v847
        %1178 = vmatmul.mubr.bf16.gmra.mrb[0].mxu0 %v846
        %v1179 = vpop.f32.mrb[0].mxu0
        %v1180 = vadd.f32 %v943, %v1179
        %v1181 = vpop.f32.mrb[0].mxu0
        %v1182 = vpop.f32.mrb[0].mxu0
        %v1183 = vadd.f32 %v943, %v1182
        %v1184 = vpop.f32.mrb[0].mxu0
        %1185 = vmatprep.mubr.bf16.mxu0 %v851
        %1186 = vmatmul.mubr.bf16.gmra.mrb[0].mxu0 %v850
        %v1187 = vpop.f32.mrb[0].mxu0
        %v1188 = vadd.f32 %v943, %v1187
        %v1189 = vpop.f32.mrb[0].mxu0
        %v1190 = vpop.f32.mrb[0].mxu0
        %v1191 = vadd.f32 %v943, %v1190
        %v1192 = vpop.f32.mrb[0].mxu0
        %1193 = vmatprep.mubr.bf16.mxu0 %v855
        %1194 = vmatmul.mubr.bf16.gmra.mrb[0].mxu0 %v854
        %v1195 = vpop.f32.mrb[0].mxu0
        %v1196 = vadd.f32 %v943, %v1195
        %v1197 = vpop.f32.mrb[0].mxu0
        %v1198 = vpop.f32.mrb[0].mxu0
        %v1199 = vadd.f32 %v943, %v1198
        %v1200 = vpop.f32.mrb[0].mxu0
        %1201 = vmatprep.mubr.bf16.mxu0 %v859
        %1202 = vmatmul.mubr.bf16.gmra.mrb[0].mxu0 %v858
        %v1203 = vpop.f32.mrb[0].mxu0
        %v1204 = vadd.f32 %v943, %v1203
        %v1205 = vpop.f32.mrb[0].mxu0
        %v1206 = vpop.f32.mrb[0].mxu0
        %v1207 = vadd.f32 %v943, %v1206
        %v1208 = vpop.f32.mrb[0].mxu0
        %1209 = vmatprep.mubr.bf16.mxu0 %v863
        %1210 = vmatmul.mubr.bf16.gmra.mrb[0].mxu0 %v862
        %v1211 = vpop.f32.mrb[0].mxu0
        %v1212 = vadd.f32 %v943, %v1211
        %v1213 = vpop.f32.mrb[0].mxu0
        %v1214 = vpop.f32.mrb[0].mxu0
        %v1215 = vadd.f32 %v943, %v1214
        %v1216 = vpop.f32.mrb[0].mxu0
        %1217 = vmatprep.mubr.bf16.mxu0 %v867
        %1218 = vmatmul.mubr.bf16.gmra.mrb[0].mxu0 %v866
        %v1219 = vpop.f32.mrb[0].mxu0
        %v1220 = vadd.f32 %v943, %v1219
        %v1221 = vpop.f32.mrb[0].mxu0
        %v1222 = vpop.f32.mrb[0].mxu0
        %v1223 = vadd.f32 %v943, %v1222
        %v1224 = vpop.f32.mrb[0].mxu0
        %1225 = vmatprep.mubr.bf16.mxu0 %v871
        %1226 = vmatmul.mubr.bf16.gmra.mrb[0].mxu0 %v870
        %v1227 = vpop.f32.mrb[0].mxu0
        %v1228 = vadd.f32 %v943, %v1227
        %v1229 = vpop.f32.mrb[0].mxu0
        %v1230 = vpop.f32.mrb[0].mxu0
        %v1231 = vadd.f32 %v943, %v1230
        %v1232 = vpop.f32.mrb[0].mxu0
        %1233 = vdwg.mxu0
        %1234 = vmatprep.subr.bf16.mxu0 0
        %1235 = vmatpush1.bf16.msra.mxu0 %v1089
        %1236 = vmatprep.subr.bf16.mxu0 0
        %1237 = vmatpush1.bf16.msra.mxu0 %v1090
        %1238 = vmatprep.subr.bf16.mxu0 0
        %1239 = vmatpush1.bf16.msra.mxu0 %v1091
        %1240 = vmatprep.subr.bf16.mxu0 0
        %1241 = vmatpush1.bf16.msra.mxu0 %v1092
        %1242 = vmatprep.subr.bf16.mxu0 0
        %1243 = vmatpush1.bf16.msra.mxu0 %v1093
        %1244 = vmatprep.subr.bf16.mxu0 0
        %1245 = vmatpush1.bf16.msra.mxu0 %v1094
        %1246 = vmatprep.subr.bf16.mxu0 0
        %1247 = vmatpush1.bf16.msra.mxu0 %v1095
        %1248 = vmatprep.subr.bf16.mxu0 0
        %1249 = vmatpush1.bf16.msra.mxu0 %v1096
        %1250 = vmatprep.subr.bf16.mxu0 0
        %1251 = vmatpush1.bf16.msra.mxu0 %v1097
        %1252 = vmatprep.subr.bf16.mxu0 0
        %1253 = vmatpush1.bf16.msra.mxu0 %v1098
        %1254 = vmatprep.subr.bf16.mxu0 0
        %1255 = vmatpush1.bf16.msra.mxu0 %v1099
        %1256 = vmatprep.subr.bf16.mxu0 0
        %1257 = vmatpush1.bf16.msra.mxu0 %v1100
        %1258 = vmatprep.subr.bf16.mxu0 0
        %1259 = vmatpush1.bf16.msra.mxu0 %v1101
        %1260 = vmatprep.subr.bf16.mxu0 0
        %1261 = vmatpush1.bf16.msra.mxu0 %v1102
        %1262 = vmatprep.subr.bf16.mxu0 0
        %1263 = vmatpush1.bf16.msra.mxu0 %v1103
        %1264 = vmatprep.subr.bf16.mxu0 0
        %1265 = vmatpush1.bf16.msra.mxu0 %v1104
        %1266 = vmatprep.mubr.bf16.mxu0 %v845
        %1267 = vmatmul.mubr.bf16.gmra.mrb[0].mxu0 %v844
        %v1268 = vpop.f32.mrb[0].mxu0
        %v1269 = vadd.f32 %v1172, %v1268
        %v1270 = vpop.f32.mrb[0].mxu0
        %v1271 = vpop.f32.mrb[0].mxu0
        %v1272 = vadd.f32 %v1175, %v1271
        %v1273 = vpop.f32.mrb[0].mxu0
        %1274 = vmatprep.mubr.bf16.mxu0 %v849
        %1275 = vmatmul.mubr.bf16.gmra.mrb[0].mxu0 %v848
        %v1276 = vpop.f32.mrb[0].mxu0
        %v1277 = vadd.f32 %v1180, %v1276
        %v1278 = vpop.f32.mrb[0].mxu0
        %v1279 = vpop.f32.mrb[0].mxu0
        %v1280 = vadd.f32 %v1183, %v1279
        %v1281 = vpop.f32.mrb[0].mxu0
        %1282 = vmatprep.mubr.bf16.mxu0 %v853
        %1283 = vmatmul.mubr.bf16.gmra.mrb[0].mxu0 %v852
        %v1284 = vpop.f32.mrb[0].mxu0
        %v1285 = vadd.f32 %v1188, %v1284
        %v1286 = vpop.f32.mrb[0].mxu0
        %v1287 = vpop.f32.mrb[0].mxu0
        %v1288 = vadd.f32 %v1191, %v1287
        %v1289 = vpop.f32.mrb[0].mxu0
        %1290 = vmatprep.mubr.bf16.mxu0 %v857
        %1291 = vmatmul.mubr.bf16.gmra.mrb[0].mxu0 %v856
        %v1292 = vpop.f32.mrb[0].mxu0
        %v1293 = vadd.f32 %v1196, %v1292
        %v1294 = vpop.f32.mrb[0].mxu0
        %v1295 = vpop.f32.mrb[0].mxu0
        %v1296 = vadd.f32 %v1199, %v1295
        %v1297 = vpop.f32.mrb[0].mxu0
        %1298 = vmatprep.mubr.bf16.mxu0 %v861
        %1299 = vmatmul.mubr.bf16.gmra.mrb[0].mxu0 %v860
        %v1300 = vpop.f32.mrb[0].mxu0
        %v1301 = vadd.f32 %v1204, %v1300
        %v1302 = vpop.f32.mrb[0].mxu0
        %v1303 = vpop.f32.mrb[0].mxu0
        %v1304 = vadd.f32 %v1207, %v1303
        %v1305 = vpop.f32.mrb[0].mxu0
        %1306 = vmatprep.mubr.bf16.mxu0 %v865
        %1307 = vmatmul.mubr.bf16.gmra.mrb[0].mxu0 %v864
        %v1308 = vpop.f32.mrb[0].mxu0
        %v1309 = vadd.f32 %v1212, %v1308
        %v1310 = vpop.f32.mrb[0].mxu0
        %v1311 = vpop.f32.mrb[0].mxu0
        %v1312 = vadd.f32 %v1215, %v1311
        %v1313 = vpop.f32.mrb[0].mxu0
        %1314 = vmatprep.mubr.bf16.mxu0 %v869
        %1315 = vmatmul.mubr.bf16.gmra.mrb[0].mxu0 %v868
        %v1316 = vpop.f32.mrb[0].mxu0
        %v1317 = vadd.f32 %v1220, %v1316
        %v1318 = vpop.f32.mrb[0].mxu0
        %v1319 = vpop.f32.mrb[0].mxu0
        %v1320 = vadd.f32 %v1223, %v1319
        %v1321 = vpop.f32.mrb[0].mxu0
        %1322 = vmatprep.mubr.bf16.mxu0 %v873
        %1323 = vmatmul.mubr.bf16.gmra.mrb[0].mxu0 %v872
        %v1324 = vpop.f32.mrb[0].mxu0
        %v1325 = vadd.f32 %v1228, %v1324
        %v1326 = vpop.f32.mrb[0].mxu0
        %v1327 = vpop.f32.mrb[0].mxu0
        %v1328 = vadd.f32 %v1231, %v1327
        %v1329 = vpop.f32.mrb[0].mxu0
        %1330 = vdwg.mxu0
        %1331 = vst [vmem:[%s309] sm:$0xff] %v778
        %1332 = vst [vmem:[%s309 + $0x8] sm:$0xff] %v779
        %1333 = vst [vmem:[%s309 + $0x10] sm:$0xff] %v780
        %1334 = vst [vmem:[%s309 + $0x18] sm:$0xff] %v781
        %1335 = vst [vmem:[%s309 + $0x20] sm:$0xff] %v782
        %1336 = vst [vmem:[%s309 + $0x28] sm:$0xff] %v783
        %1337 = vst [vmem:[%s309 + $0x30] sm:$0xff] %v784
        %1338 = vst [vmem:[%s309 + $0x38] sm:$0xff] %v785
        %1339 = vst [vmem:[%s309 + $0x40] sm:$0xff] %v786
        %1340 = vst [vmem:[%s309 + $0x48] sm:$0xff] %v787
        %1341 = vst [vmem:[%s309 + $0x50] sm:$0xff] %v788
        %1342 = vst [vmem:[%s309 + $0x58] sm:$0xff] %v789
        %1343 = vst [vmem:[%s309 + $0x60] sm:$0xff] %v790
        %1344 = vst [vmem:[%s309 + $0x68] sm:$0xff] %v791
        %1345 = vst [vmem:[%s309 + $0x70] sm:$0xff] %v792
        %1346 = vst [vmem:[%s309 + $0x78] sm:$0xff] %v793
        %1347 = vst [vmem:[%s309 + $0x80] sm:$0xff] %v794
        %1348 = vst [vmem:[%s309 + $0x88] sm:$0xff] %v795
        %1349 = vst [vmem:[%s309 + $0x90] sm:$0xff] %v796
        %1350 = vst [vmem:[%s309 + $0x98] sm:$0xff] %v797
        %1351 = vst [vmem:[%s309 + $0xa0] sm:$0xff] %v798
        %1352 = vst [vmem:[%s309 + $0xa8] sm:$0xff] %v799
        %1353 = vst [vmem:[%s309 + $0xb0] sm:$0xff] %v800
        %1354 = vst [vmem:[%s309 + $0xb8] sm:$0xff] %v801
        %1355 = vst [vmem:[%s309 + $0xc0] sm:$0xff] %v802
        %1356 = vst [vmem:[%s309 + $0xc8] sm:$0xff] %v803
        %1357 = vst [vmem:[%s309 + $0xd0] sm:$0xff] %v804
        %1358 = vst [vmem:[%s309 + $0xd8] sm:$0xff] %v805
        %1359 = vst [vmem:[%s309 + $0xe0] sm:$0xff] %v806
        %1360 = vst [vmem:[%s309 + $0xe8] sm:$0xff] %v807
        %1361 = vst [vmem:[%s309 + $0xf0] sm:$0xff] %v808
        %1362 = vst [vmem:[%s309 + $0xf8] sm:$0xff] %v809
        %1363 = vst [vmem:[%s309 + $0x100] sm:$0xff] %v810
        %1364 = vst [vmem:[%s309 + $0x108] sm:$0xff] %v811
        %1365 = vst [vmem:[%s309 + $0x110] sm:$0xff] %v812
        %1366 = vst [vmem:[%s309 + $0x118] sm:$0xff] %v813
        %1367 = vst [vmem:[%s309 + $0x120] sm:$0xff] %v814
        %1368 = vst [vmem:[%s309 + $0x128] sm:$0xff] %v815
        %1369 = vst [vmem:[%s309 + $0x130] sm:$0xff] %v816
        %1370 = vst [vmem:[%s309 + $0x138] sm:$0xff] %v817
        %1371 = vst [vmem:[%s309 + $0x140] sm:$0xff] %v818
        %1372 = vst [vmem:[%s309 + $0x148] sm:$0xff] %v819
        %1373 = vst [vmem:[%s309 + $0x150] sm:$0xff] %v820
        %1374 = vst [vmem:[%s309 + $0x158] sm:$0xff] %v821
        %1375 = vst [vmem:[%s309 + $0x160] sm:$0xff] %v822
        %1376 = vst [vmem:[%s309 + $0x168] sm:$0xff] %v823
        %1377 = vst [vmem:[%s309 + $0x170] sm:$0xff] %v824
        %1378 = vst [vmem:[%s309 + $0x178] sm:$0xff] %v825
        %1379 = vst [vmem:[%s309 + $0x180] sm:$0xff] %v826
        %1380 = vst [vmem:[%s309 + $0x188] sm:$0xff] %v827
        %1381 = vst [vmem:[%s309 + $0x190] sm:$0xff] %v828
        %1382 = vst [vmem:[%s309 + $0x198] sm:$0xff] %v829
        %1383 = vst [vmem:[%s309 + $0x1a0] sm:$0xff] %v830
        %1384 = vst [vmem:[%s309 + $0x1a8] sm:$0xff] %v831
        %1385 = vst [vmem:[%s309 + $0x1b0] sm:$0xff] %v832
        %1386 = vst [vmem:[%s309 + $0x1b8] sm:$0xff] %v833
        %1387 = vst [vmem:[%s309 + $0x1c0] sm:$0xff] %v834
        %1388 = vst [vmem:[%s309 + $0x1c8] sm:$0xff] %v835
        %1389 = vst [vmem:[%s309 + $0x1d0] sm:$0xff] %v836
        %1390 = vst [vmem:[%s309 + $0x1d8] sm:$0xff] %v837
        %1391 = vst [vmem:[%s309 + $0x1e0] sm:$0xff] %v838
        %1392 = vst [vmem:[%s309 + $0x1e8] sm:$0xff] %v839
        %1393 = vst [vmem:[%s309 + $0x1f0] sm:$0xff] %v840
        %1394 = vst [vmem:[%s309 + $0x1f8] sm:$0xff] %v841
        %1395 = vst [vmem:[%s302] sm:$0xff] %v1269
        %1396 = vst [vmem:[%s302 + $0x8] sm:$0xff] %v1272
        %1397 = vst [vmem:[%s302 + $0x10] sm:$0xff] %v1277
        %1398 = vst [vmem:[%s302 + $0x18] sm:$0xff] %v1280
        %1399 = vst [vmem:[%s302 + $0x20] sm:$0xff] %v1285
        %1400 = vst [vmem:[%s302 + $0x28] sm:$0xff] %v1288
        %1401 = vst [vmem:[%s302 + $0x30] sm:$0xff] %v1293
        %1402 = vst [vmem:[%s302 + $0x38] sm:$0xff] %v1296
        %1403 = vst [vmem:[%s302 + $0x40] sm:$0xff] %v1301
        %1404 = vst [vmem:[%s302 + $0x48] sm:$0xff] %v1304
        %1405 = vst [vmem:[%s302 + $0x50] sm:$0xff] %v1309
        %1406 = vst [vmem:[%s302 + $0x58] sm:$0xff] %v1312
        %1407 = vst [vmem:[%s302 + $0x60] sm:$0xff] %v1317
        %1408 = vst [vmem:[%s302 + $0x68] sm:$0xff] %v1320
        %1409 = vst [vmem:[%s302 + $0x70] sm:$0xff] %v1325
        %1410 = vst [vmem:[%s302 + $0x78] sm:$0xff] %v1328
        %s1411 = sand.u32 %s146, 1
        %s1412 = scalar_lea.sflag [#allocation4], %s1411
        %s1413 = sand.u32 %s146, 1
        %s1414 = smul.addr %s1413, 128
        %s1415 = scalar_lea.vmem [#allocation8], %s1414
        %s1416 = sand.u32 %s172, 1
        %s1417 = scalar_lea.sflag [#allocation10], %s1416
        %s1418 = sand.u32 %s172, 1
        %s1419 = smul.addr %s1418, 512
        %s1420 = scalar_lea.vmem [#allocation9], %s1419
        // Predicated region
        $region53: #{tpu_custom_call.1} parent=39 // pred_check
          %p1421 = pneg %p156
        $region54: #{tpu_custom_call.1} parent=39 // pred_check_branch
          %1423 = sbr.rel (%p1421) target = $region56
        $region55: #{tpu_custom_call.1} parent=39 // pred_region
          %s1424 = smul.u32 16, %s28
          %s1426 = ssub.s32 2048, 2048
          %1427 = vsyncadd %s1412, %s1426
          %s1428 = smul.addr %s1424, 128
          %s1429 = scalar_lea.hbm %s5, %s1428
          %s1430 = sshll.u32 %s1415, 4
          %s1431 = int_to_ptr.vmem [resolvable:$true] %s1430
          %1436 = dma.vmem_to_hbm [thread:$0]  %s1431, 2048, %s1429, %s1412, 128, 128, 8
        $region56: #{tpu_custom_call.1} parent=39 // pred_fallthru
          _
        // Predicated region
        $region57: #{tpu_custom_call.1} parent=39 // pred_check
          %p1437 = pneg %p182
        $region58: #{tpu_custom_call.1} parent=39 // pred_check_branch
          %1439 = sbr.rel (%p1437) target = $region60
        $region59: #{tpu_custom_call.1} parent=39 // pred_region
          %s1440 = smul.u32 16, %s28
          %s1442 = ssub.s32 8192, 8192
          %1443 = vsyncadd %s1417, %s1442
          %s1444 = smul.addr %s1440, 4
          %s1445 = smul.addr %s1444, 128
          %s1446 = scalar_lea.hbm %s6, %s1445
          %s1447 = sshll.u32 %s1420, 4
          %s1448 = int_to_ptr.vmem [resolvable:$true] %s1447
          %1453 = dma.vmem_to_hbm [thread:$0]  %s1448, 8192, %s1446, %s1417, 512, 512, 32
        $region60: #{tpu_custom_call.1} parent=39 // pred_fallthru
          _
      $region40: #{tpu_custom_call.1} parent=5 // pred_fallthru
        _
      %p1454 = scmp.le.s32.totalorder 2, %s23
      // Predicated region
      $region61: #{tpu_custom_call.1} parent=5 // pred_check
        %p1455 = pneg %p1454
      $region62: #{tpu_custom_call.1} parent=5 // pred_check_branch
        %1457 = sbr.rel (%p1455) target = $region64
      $region63: #{tpu_custom_call.1} parent=5 // pred_region
        %s1458 = ssub.s32 %s23, 2
        // Predicated region
        $region65: #{tpu_custom_call.1} parent=63 // pred_check
          %p1459 = pneg %p162
        $region66: #{tpu_custom_call.1} parent=63 // pred_check_branch
          %1461 = sbr.rel (%p1459) target = $region68
        $region67: #{tpu_custom_call.1} parent=63 // pred_region
          %s1462 = sand.u32 %s147, 1
          %s1463 = scalar_lea.sflag [#allocation4], %s1462
          %s1464 = sand.u32 %s147, 1
          %s1465 = smul.addr %s1464, 128
          %s1466 = scalar_lea.vmem [#allocation8], %s1465
          %1467 = dma.done %s1463, 2048
        $region68: #{tpu_custom_call.1} parent=63 // pred_fallthru
          _
        // Predicated region
        $region69: #{tpu_custom_call.1} parent=63 // pred_check
          %p1468 = pneg %p188
        $region70: #{tpu_custom_call.1} parent=63 // pred_check_branch
          %1470 = sbr.rel (%p1468) target = $region72
        $region71: #{tpu_custom_call.1} parent=63 // pred_region
          %s1471 = sand.u32 %s173, 1
          %s1472 = scalar_lea.sflag [#allocation10], %s1471
          %s1473 = sand.u32 %s173, 1
          %s1474 = smul.addr %s1473, 512
          %s1475 = scalar_lea.vmem [#allocation9], %s1474
          %1476 = dma.done %s1472, 8192
        $region72: #{tpu_custom_call.1} parent=63 // pred_fallthru
          _
      $region64: #{tpu_custom_call.1} parent=5 // pred_fallthru
        _
    $region6: #{tpu_custom_call.1} parent=1 // loop_footer
      %s27 = sadd.s32 1, %s23
    $region7: #{tpu_custom_call.1} parent=1 // loop_footer_branch
      %22 = sbr.rel target = $region3
    $region8: #{tpu_custom_call.1} parent=1 // loop_exit
      _
    %1477 = vsyncpa [#allocation3], 1
    %s1478 = scalar_lea.sflag [#allocation3], 1
    %1479 = vsyncpa %s1478, 1
    %1480 = vsyncpa [#allocation6], 1
    %1481 = vsyncpa [#allocation4], 1
    %s1482 = scalar_lea.sflag [#allocation4], 1
    %1483 = vsyncpa %s1482, 1
    %1484 = vsyncpa [#allocation10], 1
    %s1485 = scalar_lea.sflag [#allocation10], 1
    %1486 = vsyncpa %s1485, 1

</llo_original>
